<compile_context>
chip_gen: v7x
topology: tpu7x:2x2x1
jax: 0.10.0
libtpu: 0.0.40
codegen_flags: <defaults>
</compile_context>

<pallas_src>
import jax
import jax.numpy as jnp
from jax.experimental import pallas as pl
from jax.experimental.pallas import tpu as pltpu


# Set to jnp.bfloat16 for ~3x MXU throughput (accumulation stays f32 via
# preferred_element_type); default f32 keeps exact module semantics.
MXU_DTYPE = jnp.float32


def _pick_query_tile(hw: int) -> int:
    """Largest 128-aligned query tile dividing HW (falls back to full HW)."""
    for t in (256, 128):
        if hw % t == 0:
            return t
    return hw


# ----------------------------------------------------------------------------
# Kernel 1 (tiny): Q = 1x1 conv(x).  grid axis = batch.
#   (C_out, C_in) @ (C_in, HW) + bias -> (C_out, HW)
# ----------------------------------------------------------------------------
def q_conv_kernel(x_ref, wq_ref, bq_ref, q_ref):
    q_ref[0] = (jnp.dot(wq_ref[...].astype(MXU_DTYPE),
                        x_ref[0].astype(MXU_DTYPE),
                        preferred_element_type=jnp.float32)
                + bq_ref[...])


# ----------------------------------------------------------------------------
# Kernel 2 (fused): stacked K/V conv (once per batch, persistent VMEM scratch)
#                   + scores + softmax + value aggregation + gated residual,
#                   tiled over the query-position axis.
#   grid = (B, HW // TQ);   batch -> "parallel",  q-tile -> "arbitrary".
# ----------------------------------------------------------------------------
def fused_kv_attn_kernel(qv_ref, y_ref, x_ref, wkv_ref, bkv_ref, g_ref,
                         o_ref, k_scr, vt_scr):
    C_out = o_ref.shape[1]          # out block (1, C_out, TQ)

    # --- once per batch: stacked K/V 1x1 conv into VMEM scratch (no HBM) ----
    @pl.when(pl.program_id(1) == 0)
    def _():
        kv = (jnp.dot(wkv_ref[...].astype(MXU_DTYPE),
                      y_ref[0].astype(MXU_DTYPE),
                      preferred_element_type=jnp.float32)
              + bkv_ref[...])                        # (2C, HW)
        k_scr[...] = kv[:C_out, :]                   # (C, HW)
        # Store V transposed so the per-tile value matmul is a plain NN matmul
        # (avoids transposing the (TQ, HW) probability matrix every q-tile).
        vt_scr[...] = kv[C_out:, :].T                # (HW, C)

    # --- per q-tile: scores -> softmax -> aggregate -> gated residual -------
    q_tile = qv_ref[0]                               # (TQ, C)  raw-view of q
    s = jnp.dot(q_tile.astype(MXU_DTYPE), k_scr[...].astype(MXU_DTYPE),
                preferred_element_type=jnp.float32)  # (TQ, HW)
    s = s - jnp.max(s, axis=-1, keepdims=True)
    p = jnp.exp(s)
    p = p * pl.reciprocal(jnp.sum(p, axis=-1, keepdims=True), approx=False)

    o_t = jnp.dot(p.astype(MXU_DTYPE), vt_scr[...].astype(MXU_DTYPE),
                  preferred_element_type=jnp.float32)  # (TQ, C)
    o_ref[0] = g_ref[0] * o_t.T + x_ref[0]             # (C, TQ) + residual


# ----------------------------------------------------------------------------
# Host wrapper
# ----------------------------------------------------------------------------
@jax.jit
def progressive_luong_attention(x, y, wq, bq, wk, bk, wv, bv, gamma):
    B, C_in, H, W = x.shape
    C_out = wq.shape[0]
    assert C_in == C_out, "residual `gamma*out + x` requires in_channels == out_channels"
    HW = H * W
    TQ = _pick_query_tile(HW)
    n_qt = HW // TQ

    x2 = x.reshape(B, C_in, HW)
    y2 = y.reshape(B, C_in, HW)

    # Stack K and V projections so the fused kernel does a single conv matmul.
    wkv = jnp.concatenate([wk, wv], axis=0)                 # (2*C_out, C_in)
    bkv = jnp.concatenate([bk, bv], axis=0).reshape(2 * C_out, 1)
    bq2 = bq.reshape(C_out, 1)

    # ---- call 1: Q projection ------------------------------------------------
    q = pl.pallas_call(
        q_conv_kernel,
        grid=(B,),
        in_specs=[pl.BlockSpec((1, C_in, HW), lambda b: (b, 0, 0)),
                  pl.BlockSpec((C_out, C_in), lambda b: (0, 0)),
                  pl.BlockSpec((C_out, 1), lambda b: (0, 0))],
        out_specs=pl.BlockSpec((1, C_out, HW), lambda b: (b, 0, 0)),
        out_shape=jax.ShapeDtypeStruct((B, C_out, HW), jnp.float32),
        compiler_params=pltpu.CompilerParams(dimension_semantics=("parallel",)),
    )(x2, wq, bq2)

    # Exact reproduction of PyTorch's `query.view(B, -1, C_out)`: a row-major
    # reinterpretation of the contiguous (C_out, H, W) buffer as (HW, C_out).
    # Under jit this reshape of a contiguous buffer is a metadata-only bitcast.
    q_view = q.reshape(B, HW, C_out)

    # ---- call 2: fused K/V conv + attention + softmax + gated residual -------
    out2 = pl.pallas_call(
        fused_kv_attn_kernel,
        grid=(B, n_qt),
        in_specs=[pl.BlockSpec((1, TQ, C_out), lambda b, t: (b, t, 0)),    # q_view tile
                  pl.BlockSpec((1, C_in, HW), lambda b, t: (b, 0, 0)),     # y (all positions)
                  pl.BlockSpec((1, C_in, TQ), lambda b, t: (b, 0, t)),     # x residual tile
                  pl.BlockSpec((2 * C_out, C_in), lambda b, t: (0, 0)),    # Wkv
                  pl.BlockSpec((2 * C_out, 1), lambda b, t: (0, 0)),       # bkv
                  pl.BlockSpec(memory_space=pltpu.MemorySpace.SMEM)],      # gamma
        out_specs=pl.BlockSpec((1, C_out, TQ), lambda b, t: (b, 0, t)),
        out_shape=jax.ShapeDtypeStruct((B, C_out, HW), jnp.float32),
        scratch_shapes=[pltpu.VMEM((C_out, HW), jnp.float32),   # K
                        pltpu.VMEM((HW, C_out), jnp.float32)],  # V^T
        compiler_params=pltpu.CompilerParams(
            dimension_semantics=("parallel", "arbitrary")),
    )(q_view, y2, x2, wkv, bkv, gamma)

    return out2.reshape(B, C_out, H, W)


# ----------------------------------------------------------------------------
# Pure-JAX reference (mirrors the PyTorch forward exactly)
# ----------------------------------------------------------------------------
def reference(x, y, wq, bq, wk, bk, wv, bv, gamma):
    B, C, H, W = x.shape
    C_out = wq.shape[0]
    HW = H * W
    xm = x.reshape(B, C, HW)
    ym = y.reshape(B, C, HW)
    q = jnp.einsum('oc,bcp->bop', wq, xm) + bq[None, :, None]
    k = jnp.einsum('oc,bcp->bop', wk, ym) + bk[None, :, None]
    v = jnp.einsum('oc,bcp->bop', wv, ym) + bv[None, :, None]
    q_view = q.reshape(B, HW, C_out)                  # same raw-view semantics as torch
    attn = jax.nn.softmax(jnp.einsum('bpc,bcj->bpj', q_view, k), axis=-1)
    out = jnp.einsum('bcj,bpj->bcp', v, attn)
    out = gamma[0] * out + xm
    return out.reshape(B, C_out, H, W)


if __name__ == "__main__":
    B, C, H, W = 2, 32, 8, 8          # in_channels == out_channels == 32

    key = jax.random.PRNGKey(0)
    kx, ky, kwq, kwk, kwv, kbq, kbk, kbv = jax.random.split(key, 8)

    x = jax.random.normal(kx, (B, C, H, W), dtype=jnp.float32)
    y = jax.random.normal(ky, (B, C, H, W), dtype=jnp.float32)

    # Conv2d(C, C, 1) params: weight (C_out, C_in, 1, 1) -> (C_out, C_in), bias (C_out,)
    scale = 1.0 / jnp.sqrt(jnp.float32(C))
    wq = jax.random.uniform(kwq, (C, C), jnp.float32, -scale, scale)
    wk = jax.random.uniform(kwk, (C, C), jnp.float32, -scale, scale)
    wv = jax.random.uniform(kwv, (C, C), jnp.float32, -scale, scale)
    bq = jax.random.uniform(kbq, (C,), jnp.float32, -scale, scale)
    bk = jax.random.uniform(kbk, (C,), jnp.float32, -scale, scale)
    bv = jax.random.uniform(kbv, (C,), jnp.float32, -scale, scale)
    # PyTorch inits gamma to 0 (which would make out == x); use a nonzero value
    # so the attention path is actually exercised by the check.
    gamma = jnp.array([0.5], dtype=jnp.float32)

    out = progressive_luong_attention(x, y, wq, bq, wk, bk, wv, bv, gamma)
    out = jax.block_until_ready(out)

    ref = reference(x, y, wq, bq, wk, bk, wv, bv, gamma)
    assert out.shape == (B, C, H, W)
    assert jnp.allclose(out, ref, rtol=1e-5, atol=1e-5), \
        f"max abs err = {jnp.max(jnp.abs(out - ref))}"

    print("KERNEL_OK")
</pallas_src>

<mosaic_0001>
module attributes {stable_mosaic.version = 11 : i64} {
  func.func @fused_kv_attn_kernel(%arg0: i32, %arg1: i32, %arg2: memref<1x64x32xf32, #tpu.memory_space<vmem>>, %arg3: memref<1x32x64xf32, #tpu.memory_space<vmem>>, %arg4: memref<1x32x64xf32, #tpu.memory_space<vmem>>, %arg5: memref<64x32xf32, #tpu.memory_space<vmem>>, %arg6: memref<64x1xf32, #tpu.memory_space<vmem>>, %arg7: memref<1xf32, #tpu.memory_space<smem>>, %arg8: memref<1x32x64xf32, #tpu.memory_space<vmem>>, %arg9: memref<32x64xf32, #tpu.memory_space<vmem>>, %arg10: memref<64x32xf32, #tpu.memory_space<vmem>>) attributes {dimension_semantics = [#tpu.dimension_semantics<parallel>, #tpu.dimension_semantics<arbitrary>], iteration_bounds = array<i64: 2, 1>, scalar_prefetch = 0 : i64, scratch_operands = 2 : i64, tpu.core_type = #tpu.core_type<tc>, window_params = [{transform_indices = @transform_0, window_bounds = array<i64: 1, 64, 32>}, {transform_indices = @transform_1, window_bounds = array<i64: 1, 32, 64>}, {transform_indices = @transform_2, window_bounds = array<i64: 1, 32, 64>}, {pipeline_mode = #tpu.pipeline_mode<synchronous>, transform_indices = @transform_3, window_bounds = array<i64: 64, 32>}, {pipeline_mode = #tpu.pipeline_mode<synchronous>, transform_indices = @transform_4, window_bounds = array<i64: 64, 1>}, {transform_indices = @transform_5, window_bounds = array<i64: 1>}, {transform_indices = @transform_6, window_bounds = array<i64: 1, 32, 64>}]} {
    %c0_i32 = arith.constant 0 : i32
    %0 = arith.cmpi eq, %arg1, %c0_i32 : i32
    %1 = arith.extui %0 : i1 to i32
    %c0_i32_0 = arith.constant 0 : i32
    %2 = arith.cmpi ne, %1, %c0_i32_0 : i32
    scf.if %2 {
      %c0_17 = arith.constant 0 : index
      %c0_18 = arith.constant 0 : index
      %29 = vector.load %arg5[%c0_17, %c0_18] : memref<64x32xf32, #tpu.memory_space<vmem>>, vector<64x32xf32>
      %c0_19 = arith.constant 0 : index
      %c0_20 = arith.constant 0 : index
      %c0_21 = arith.constant 0 : index
      %30 = vector.load %arg3[%c0_19, %c0_20, %c0_21] : memref<1x32x64xf32, #tpu.memory_space<vmem>>, vector<1x32x64xf32>
      %31 = vector.shape_cast %30 : vector<1x32x64xf32> to vector<32x64xf32>
      %cst_22 = arith.constant dense<0.000000e+00> : vector<64x64xf32>
      %32 = tpu.matmul %29, %31, %cst_22 {dimension_numbers = #tpu.dot_dimension_numbers<[1], [0], [0], [1], [0, 0, 1, 1], [], []>} : vector<64x32xf32>, vector<32x64xf32>, vector<64x64xf32> -> vector<64x64xf32>
      %c0_23 = arith.constant 0 : index
      %c0_24 = arith.constant 0 : index
      %33 = vector.load %arg6[%c0_23, %c0_24] : memref<64x1xf32, #tpu.memory_space<vmem>>, vector<64x1xf32>
      %34 = vector.broadcast %33 : vector<64x1xf32> to vector<64x64xf32>
      %35 = arith.addf %32, %34 : vector<64x64xf32>
      %36 = vector.extract_strided_slice %35 {offsets = [0, 0], sizes = [32, 64], strides = [1, 1]} : vector<64x64xf32> to vector<32x64xf32>
      %c0_25 = arith.constant 0 : index
      %c0_26 = arith.constant 0 : index
      %37 = vector.load %arg9[%c0_25, %c0_26] : memref<32x64xf32, #tpu.memory_space<vmem>>, vector<32x64xf32>
      tpu.vector_store %arg9[%c0_25, %c0_26], %36 {strides = array<i32>} : memref<32x64xf32, #tpu.memory_space<vmem>>, vector<32x64xf32>,
      %38 = vector.extract_strided_slice %35 {offsets = [32, 0], sizes = [32, 64], strides = [1, 1]} : vector<64x64xf32> to vector<32x64xf32>
      %39 = tpu.transpose %38, [1, 0] : vector<32x64xf32> -> vector<64x32xf32>
      %c0_27 = arith.constant 0 : index
      %c0_28 = arith.constant 0 : index
      %40 = vector.load %arg10[%c0_27, %c0_28] : memref<64x32xf32, #tpu.memory_space<vmem>>, vector<64x32xf32>
      tpu.vector_store %arg10[%c0_27, %c0_28], %39 {strides = array<i32>} : memref<64x32xf32, #tpu.memory_space<vmem>>, vector<64x32xf32>,
    } else {
    }
    %c0 = arith.constant 0 : index
    %c0_1 = arith.constant 0 : index
    %c0_2 = arith.constant 0 : index
    %3 = vector.load %arg2[%c0, %c0_1, %c0_2] : memref<1x64x32xf32, #tpu.memory_space<vmem>>, vector<1x64x32xf32>
    %4 = vector.shape_cast %3 : vector<1x64x32xf32> to vector<64x32xf32>
    %c0_3 = arith.constant 0 : index
    %c0_4 = arith.constant 0 : index
    %5 = vector.load %arg9[%c0_3, %c0_4] : memref<32x64xf32, #tpu.memory_space<vmem>>, vector<32x64xf32>
    %cst = arith.constant dense<0.000000e+00> : vector<64x64xf32>
    %6 = tpu.matmul %4, %5, %cst {dimension_numbers = #tpu.dot_dimension_numbers<[1], [0], [0], [1], [0, 0, 1, 1], [], []>} : vector<64x32xf32>, vector<32x64xf32>, vector<64x64xf32> -> vector<64x64xf32>
    %cst_5 = arith.constant dense<0xFF800000> : vector<64xf32>
    %7 = vector.multi_reduction <maximumf>, %6, %cst_5 [1] : vector<64x64xf32> to vector<64xf32>
    %8 = vector.shape_cast %7 : vector<64xf32> to vector<64x1xf32>
    %9 = vector.broadcast %8 : vector<64x1xf32> to vector<64x64xf32>
    %10 = arith.subf %6, %9 : vector<64x64xf32>
    %11 = math.exp %10 : vector<64x64xf32>
    %cst_6 = arith.constant dense<0.000000e+00> : vector<64xf32>
    %12 = vector.multi_reduction <add>, %11, %cst_6 [1] : vector<64x64xf32> to vector<64xf32>
    %13 = vector.shape_cast %12 : vector<64xf32> to vector<64x1xf32>
    %14 = tpu.reciprocal %13 : vector<64x1xf32> -> vector<64x1xf32>
    %15 = vector.broadcast %14 : vector<64x1xf32> to vector<64x64xf32>
    %16 = arith.mulf %11, %15 : vector<64x64xf32>
    %c0_7 = arith.constant 0 : index
    %c0_8 = arith.constant 0 : index
    %17 = vector.load %arg10[%c0_7, %c0_8] : memref<64x32xf32, #tpu.memory_space<vmem>>, vector<64x32xf32>
    %cst_9 = arith.constant dense<0.000000e+00> : vector<64x32xf32>
    %18 = tpu.matmul %16, %17, %cst_9 {dimension_numbers = #tpu.dot_dimension_numbers<[1], [0], [0], [1], [0, 0, 1, 1], [], []>} : vector<64x64xf32>, vector<64x32xf32>, vector<64x32xf32> -> vector<64x32xf32>
    %c0_10 = arith.constant 0 : index
    %19 = memref.load %arg7[%c0_10] : memref<1xf32, #tpu.memory_space<smem>>
    %20 = tpu.transpose %18, [1, 0] : vector<64x32xf32> -> vector<32x64xf32>
    %21 = vector.broadcast %19 : f32 to vector<32x64xf32>
    %22 = arith.mulf %21, %20 : vector<32x64xf32>
    %c0_11 = arith.constant 0 : index
    %c0_12 = arith.constant 0 : index
    %c0_13 = arith.constant 0 : index
    %23 = vector.load %arg4[%c0_11, %c0_12, %c0_13] : memref<1x32x64xf32, #tpu.memory_space<vmem>>, vector<1x32x64xf32>
    %24 = vector.shape_cast %23 : vector<1x32x64xf32> to vector<32x64xf32>
    %25 = arith.addf %22, %24 : vector<32x64xf32>
    %c0_14 = arith.constant 0 : index
    %c0_15 = arith.constant 0 : index
    %c0_16 = arith.constant 0 : index
    %26 = vector.load %arg8[%c0_14, %c0_15, %c0_16] : memref<1x32x64xf32, #tpu.memory_space<vmem>>, vector<1x32x64xf32>
    %27 = vector.shape_cast %26 : vector<1x32x64xf32> to vector<32x64xf32>
    %28 = vector.shape_cast %25 : vector<32x64xf32> to vector<1x32x64xf32>
    tpu.vector_store %arg8[%c0_14, %c0_15, %c0_16], %28 {strides = array<i32>} : memref<1x32x64xf32, #tpu.memory_space<vmem>>, vector<1x32x64xf32>,
    return
  }
  func.func @transform_0(%arg0: i32, %arg1: i32) -> (i32, i32, i32) {
    %c0_i32 = arith.constant 0 : i32
    %c0_i32_0 = arith.constant 0 : i32
    return %arg0, %arg1, %c0_i32 : i32, i32, i32
  }
  func.func @transform_1(%arg0: i32, %arg1: i32) -> (i32, i32, i32) {
    %c0_i32 = arith.constant 0 : i32
    %c0_i32_0 = arith.constant 0 : i32
    %c0_i32_1 = arith.constant 0 : i32
    return %arg0, %c0_i32, %c0_i32_0 : i32, i32, i32
  }
  func.func @transform_2(%arg0: i32, %arg1: i32) -> (i32, i32, i32) {
    %c0_i32 = arith.constant 0 : i32
    %c0_i32_0 = arith.constant 0 : i32
    return %arg0, %c0_i32, %arg1 : i32, i32, i32
  }
  func.func @transform_3(%arg0: i32, %arg1: i32) -> (i32, i32) {
    %c0_i32 = arith.constant 0 : i32
    %c0_i32_0 = arith.constant 0 : i32
    %c0_i32_1 = arith.constant 0 : i32
    return %c0_i32, %c0_i32_0 : i32, i32
  }
  func.func @transform_4(%arg0: i32, %arg1: i32) -> (i32, i32) {
    %c0_i32 = arith.constant 0 : i32
    %c0_i32_0 = arith.constant 0 : i32
    %c0_i32_1 = arith.constant 0 : i32
    return %c0_i32, %c0_i32_0 : i32, i32
  }
  func.func @transform_5(%arg0: i32, %arg1: i32) -> i32 {
    %c0_i32 = arith.constant 0 : i32
    %c0_i32_0 = arith.constant 0 : i32
    return %c0_i32 : i32
  }
  func.func @transform_6(%arg0: i32, %arg1: i32) -> (i32, i32, i32) {
    %c0_i32 = arith.constant 0 : i32
    %c0_i32_0 = arith.constant 0 : i32
    return %arg0, %c0_i32, %arg1 : i32, i32, i32
  }
}

module attributes {stable_mosaic.version = 11 : i64} {
  func.func @q_conv_kernel(%arg0: i32, %arg1: memref<1x32x64xf32, #tpu.memory_space<vmem>>, %arg2: memref<32x32xf32, #tpu.memory_space<vmem>>, %arg3: memref<32x1xf32, #tpu.memory_space<vmem>>, %arg4: memref<1x32x64xf32, #tpu.memory_space<vmem>>) attributes {dimension_semantics = [#tpu.dimension_semantics<parallel>], iteration_bounds = array<i64: 2>, scalar_prefetch = 0 : i64, scratch_operands = 0 : i64, tpu.core_type = #tpu.core_type<tc>, window_params = [{transform_indices = @transform_0, window_bounds = array<i64: 1, 32, 64>}, {pipeline_mode = #tpu.pipeline_mode<synchronous>, transform_indices = @transform_1, window_bounds = array<i64: 32, 32>}, {pipeline_mode = #tpu.pipeline_mode<synchronous>, transform_indices = @transform_2, window_bounds = array<i64: 32, 1>}, {transform_indices = @transform_3, window_bounds = array<i64: 1, 32, 64>}]} {
    %c0 = arith.constant 0 : index
    %c0_0 = arith.constant 0 : index
    %0 = vector.load %arg2[%c0, %c0_0] : memref<32x32xf32, #tpu.memory_space<vmem>>, vector<32x32xf32>
    %c0_1 = arith.constant 0 : index
    %c0_2 = arith.constant 0 : index
    %c0_3 = arith.constant 0 : index
    %1 = vector.load %arg1[%c0_1, %c0_2, %c0_3] : memref<1x32x64xf32, #tpu.memory_space<vmem>>, vector<1x32x64xf32>
    %2 = vector.shape_cast %1 : vector<1x32x64xf32> to vector<32x64xf32>
    %cst = arith.constant dense<0.000000e+00> : vector<32x64xf32>
    %3 = tpu.matmul %0, %2, %cst {dimension_numbers = #tpu.dot_dimension_numbers<[1], [0], [0], [1], [0, 0, 1, 1], [], []>} : vector<32x32xf32>, vector<32x64xf32>, vector<32x64xf32> -> vector<32x64xf32>
    %c0_4 = arith.constant 0 : index
    %c0_5 = arith.constant 0 : index
    %4 = vector.load %arg3[%c0_4, %c0_5] : memref<32x1xf32, #tpu.memory_space<vmem>>, vector<32x1xf32>
    %5 = vector.broadcast %4 : vector<32x1xf32> to vector<32x64xf32>
    %6 = arith.addf %3, %5 : vector<32x64xf32>
    %c0_6 = arith.constant 0 : index
    %c0_7 = arith.constant 0 : index
    %c0_8 = arith.constant 0 : index
    %7 = vector.load %arg4[%c0_6, %c0_7, %c0_8] : memref<1x32x64xf32, #tpu.memory_space<vmem>>, vector<1x32x64xf32>
    %8 = vector.shape_cast %7 : vector<1x32x64xf32> to vector<32x64xf32>
    %9 = vector.shape_cast %6 : vector<32x64xf32> to vector<1x32x64xf32>
    tpu.vector_store %arg4[%c0_6, %c0_7, %c0_8], %9 {strides = array<i32>} : memref<1x32x64xf32, #tpu.memory_space<vmem>>, vector<1x32x64xf32>,
    return
  }
  func.func @transform_0(%arg0: i32) -> (i32, i32, i32) {
    %c0_i32 = arith.constant 0 : i32
    %c0_i32_0 = arith.constant 0 : i32
    %c0_i32_1 = arith.constant 0 : i32
    return %arg0, %c0_i32, %c0_i32_0 : i32, i32, i32
  }
  func.func @transform_1(%arg0: i32) -> (i32, i32) {
    %c0_i32 = arith.constant 0 : i32
    %c0_i32_0 = arith.constant 0 : i32
    %c0_i32_1 = arith.constant 0 : i32
    return %c0_i32, %c0_i32_0 : i32, i32
  }
  func.func @transform_2(%arg0: i32) -> (i32, i32) {
    %c0_i32 = arith.constant 0 : i32
    %c0_i32_0 = arith.constant 0 : i32
    %c0_i32_1 = arith.constant 0 : i32
    return %c0_i32, %c0_i32_0 : i32, i32
  }
  func.func @transform_3(%arg0: i32) -> (i32, i32, i32) {
    %c0_i32 = arith.constant 0 : i32
    %c0_i32_0 = arith.constant 0 : i32
    %c0_i32_1 = arith.constant 0 : i32
    return %arg0, %c0_i32, %c0_i32_0 : i32, i32, i32
  }
}

</mosaic_0001>

<llo_original>
// kernel: progressive_luong_attention.2
$region0: #{progressive_luong_attention.2}
  #allocation0 [shape = 'u32[]', space=smem, size = 0x4, offset = 0x4, fixed_abs, tag = 'smem constant byte address 0x4 - core index']
  #allocation1 [shape = 'u32[144,128]{1,0:T(1,128)}', space=vmem, size = 0x12000, scoped, tag = 'internal scratch']
  %s0 = inlined_call_operand.vmem [shape: f32[2,32,64], index: 0, kind: input, shape index: {}]
  %s1 = inlined_call_operand.vmem [shape: f32[32,32], index: 1, kind: input, shape index: {}]
  %s2 = inlined_call_operand.vmem [shape: f32[32,1], index: 2, kind: input, shape index: {}]
  %s3 = inlined_call_operand.vmem [shape: f32[2,32,64], index: 3, kind: output, shape index: {}]
  %s4 = sld [smem:[#allocation0]]
  $region45: #{progressive_luong_attention.2} parent=0
    _
  %s6 = ssub.s32 1, %s4
  %s7 = scalar_select 0, %s6, %s4
  loop: start=0, step=1, limit=4
  $region2: #{progressive_luong_attention.2} parent=0 // loop_pre_header
    _
  $region3: #{progressive_luong_attention.2} parent=0 // loop_header
    %s9 = sphi 0, %s13
    %p10 = scmp.ge.s32.totalorder %s9, 4
    %s19 = sphi 0, %s21
    %s22 = sphi 0, %s19
    %s23 = sphi 0, %s22
    %s39 = sphi 0, %s23
    %s43 = sphi 0, %s43
    %s45 = sphi 0, %s43
    %s46 = sphi 0, %s45
    %s60 = sphi 0, %s46
    %s64 = sphi 0, %s64
    %s66 = sphi 0, %s64
    %s67 = sphi 0, %s66
    %s81 = sphi 0, %s67
    %s87 = sphi 0, %s89
    %s90 = sphi 0, %s87
    %s91 = sphi 0, %s90
    %s107 = sphi 0, %s91
  $region4: #{progressive_luong_attention.2} parent=0 // loop_header_branch
    %12 = sbr.rel (%p10) target = $region8
  $region5: #{progressive_luong_attention.2} parent=0 // loop_body
    %s14 = ssub.s32 %s9, 1
    %s15 = ssub.s32 %s9, 2
    %s16 = sadd.s32 %s9, 1
    %s17 = ssub.s32 %s9, %s16
    %p18 = scmp.eq.s32.totalorder %s17, 0
    %s20 = sadd.s32 %s19, 1
    %s21 = scalar_select %p18, %s19, %s20
    %p24 = pneg %p18
    %p25 = scmp.eq.s32.totalorder %s9, 1
    %p26 = por %p24, %p25
    %p27 = scmp.ne.s32.totalorder %s19, %s22
    %p28 = scmp.eq.s32.totalorder %s9, 0
    %p29 = por %p27, %p28
    %p30 = scmp.ne.s32.totalorder %s19, %s22
    %p31 = scmp.eq.s32.totalorder %s14, 1
    %p32 = por %p30, %p31
    %p33 = scmp.ne.s32.totalorder %s22, %s23
    %p34 = scmp.eq.s32.totalorder %s14, 0
    %p35 = por %p33, %p34
    %p36 = scmp.ne.s32.totalorder %s22, %s23
    %p37 = scmp.eq.s32.totalorder %s15, 1
    %p38 = por %p36, %p37
    %p40 = scmp.ne.s32.totalorder %s23, %s39
    %p41 = scmp.eq.s32.totalorder %s15, 0
    %p42 = por %p40, %p41
    %s44 = sadd.s32 %s43, 1
    %p47 = scmp.eq.s32.totalorder %s9, 1
    %p48 = scmp.ne.s32.totalorder %s43, %s45
    %p49 = scmp.eq.s32.totalorder %s9, 0
    %p50 = por %p48, %p49
    %p51 = scmp.ne.s32.totalorder %s43, %s45
    %p52 = scmp.eq.s32.totalorder %s14, 1
    %p53 = por %p51, %p52
    %p54 = scmp.ne.s32.totalorder %s45, %s46
    %p55 = scmp.eq.s32.totalorder %s14, 0
    %p56 = por %p54, %p55
    %p57 = scmp.ne.s32.totalorder %s45, %s46
    %p58 = scmp.eq.s32.totalorder %s15, 1
    %p59 = por %p57, %p58
    %p61 = scmp.ne.s32.totalorder %s46, %s60
    %p62 = scmp.eq.s32.totalorder %s15, 0
    %p63 = por %p61, %p62
    %s65 = sadd.s32 %s64, 1
    %p68 = scmp.eq.s32.totalorder %s9, 1
    %p69 = scmp.ne.s32.totalorder %s64, %s66
    %p70 = scmp.eq.s32.totalorder %s9, 0
    %p71 = por %p69, %p70
    %p72 = scmp.ne.s32.totalorder %s64, %s66
    %p73 = scmp.eq.s32.totalorder %s14, 1
    %p74 = por %p72, %p73
    %p75 = scmp.ne.s32.totalorder %s66, %s67
    %p76 = scmp.eq.s32.totalorder %s14, 0
    %p77 = por %p75, %p76
    %p78 = scmp.ne.s32.totalorder %s66, %s67
    %p79 = scmp.eq.s32.totalorder %s15, 1
    %p80 = por %p78, %p79
    %p82 = scmp.ne.s32.totalorder %s67, %s81
    %p83 = scmp.eq.s32.totalorder %s15, 0
    %p84 = por %p82, %p83
    %s85 = ssub.s32 %s9, %s16
    %p86 = scmp.eq.s32.totalorder %s85, 0
    %s88 = sadd.s32 %s87, 1
    %s89 = scalar_select %p86, %s87, %s88
    %p92 = pneg %p86
    %p93 = scmp.eq.s32.totalorder %s9, 1
    %p94 = por %p92, %p93
    %p95 = scmp.ne.s32.totalorder %s87, %s90
    %p96 = scmp.eq.s32.totalorder %s9, 0
    %p97 = por %p95, %p96
    %p98 = scmp.ne.s32.totalorder %s87, %s90
    %p99 = scmp.eq.s32.totalorder %s14, 1
    %p100 = por %p98, %p99
    %p101 = scmp.ne.s32.totalorder %s90, %s91
    %p102 = scmp.eq.s32.totalorder %s14, 0
    %p103 = por %p101, %p102
    %p104 = scmp.ne.s32.totalorder %s90, %s91
    %p105 = scmp.eq.s32.totalorder %s15, 1
    %p106 = por %p104, %p105
    %p108 = scmp.ne.s32.totalorder %s91, %s107
    %p109 = scmp.eq.s32.totalorder %s15, 0
    %p110 = por %p108, %p109
    %p111 = scmp.le.s32.totalorder 1, %s9
    %p112 = scmp.lt.s32.totalorder %s9, 3
    %p113 = pnand %p111, %p112
    %p114 = pneg %p113
    // Predicated region
    $region9: #{progressive_luong_attention.2} parent=5 // pred_check
      _
    $region10: #{progressive_luong_attention.2} parent=5 // pred_check_branch
      %116 = sbr.rel (%p113) target = $region12
    $region11: #{progressive_luong_attention.2} parent=5 // pred_region
      %s117 = ssub.s32 %s9, 1
      // Predicated region
      $region13: #{progressive_luong_attention.2} parent=11 // pred_check
        %p118 = pneg %p56
      $region14: #{progressive_luong_attention.2} parent=11 // pred_check_branch
        %120 = sbr.rel (%p118) target = $region16
      $region15: #{progressive_luong_attention.2} parent=11 // pred_region
        _
      $region16: #{progressive_luong_attention.2} parent=11 // pred_fallthru
        _
      // Predicated region
      $region17: #{progressive_luong_attention.2} parent=11 // pred_check
        %p121 = pneg %p77
      $region18: #{progressive_luong_attention.2} parent=11 // pred_check_branch
        %123 = sbr.rel (%p121) target = $region20
      $region19: #{progressive_luong_attention.2} parent=11 // pred_region
        _
      $region20: #{progressive_luong_attention.2} parent=11 // pred_fallthru
        _
    $region12: #{progressive_luong_attention.2} parent=5 // pred_fallthru
      _
    %p124 = scmp.lt.s32.totalorder %s9, 2
    // Predicated region
    $region21: #{progressive_luong_attention.2} parent=5 // pred_check
      %p125 = pneg %p124
    $region22: #{progressive_luong_attention.2} parent=5 // pred_check_branch
      %127 = sbr.rel (%p125) target = $region24
    $region23: #{progressive_luong_attention.2} parent=5 // pred_region
      // Predicated region
      $region25: #{progressive_luong_attention.2} parent=23 // pred_check
        %p128 = pneg %p29
      $region26: #{progressive_luong_attention.2} parent=23 // pred_check_branch
        %130 = sbr.rel (%p128) target = $region28
      $region27: #{progressive_luong_attention.2} parent=23 // pred_region
        %p131 = scmp.lt.s32.totalorder %s9, 1
        %s132 = scalar_select %p131, %s9, 1
        %s133 = smul.addr %s132, 4
        %s134 = smul.addr %s133, 8
        %s135 = scalar_lea.vmem %s0, %s134
      $region28: #{progressive_luong_attention.2} parent=23 // pred_fallthru
        _
    $region24: #{progressive_luong_attention.2} parent=5 // pred_fallthru
      _
    %p136 = scmp.le.s32.totalorder 1, %s9
    %p137 = scmp.lt.s32.totalorder %s9, 3
    %p138 = pnand %p136, %p137
    %p139 = pneg %p138
    // Predicated region
    $region29: #{progressive_luong_attention.2} parent=5 // pred_check
      _
    $region30: #{progressive_luong_attention.2} parent=5 // pred_check_branch
      %141 = sbr.rel (%p138) target = $region32
    $region31: #{progressive_luong_attention.2} parent=5 // pred_region
      %s142 = ssub.s32 %s9, 1
      %p143 = scmp.lt.s32.totalorder %s14, 1
      %s144 = scalar_select %p143, %s14, 1
      %s145 = smul.addr %s144, 4
      %s146 = smul.addr %s145, 8
      %s147 = scalar_lea.vmem %s0, %s146
      %p148 = pneg %p35
      %p149 = pneg %p32
      %p150 = pneg %p56
      %p151 = pneg %p53
      %p152 = pneg %p77
      %p153 = pneg %p74
      %p154 = pneg %p103
      %p155 = pneg %p100
      %p156 = scmp.lt.s32.totalorder %s14, 1
      %s157 = scalar_select %p156, %s14, 1
      %s158 = smul.addr %s157, 4
      %s159 = smul.addr %s158, 8
      %s160 = scalar_lea.vmem %s3, %s159
      %p161 = scmp.lt.s32.totalorder %s14, 1
      %s162 = scalar_select %p161, %s14, 1
      %s163 = smul.addr %s162, 4
      %s164 = smul.addr %s163, 8
      %s165 = scalar_lea.vmem %s0, %s164
      %p166 = scmp.lt.s32.totalorder %s14, 1
      %s167 = scalar_select %p166, %s14, 1
      %s168 = smul.addr %s167, 4
      %s169 = smul.addr %s168, 8
      %s170 = scalar_lea.vmem %s3, %s169
      %v171 = vld [vmem:[%s1] sm:$0xff]
      %v172 = vld [vmem:[%s1 + $0x8] sm:$0xff]
      %v173 = vld [vmem:[%s1 + $0x10] sm:$0xff]
      %v174 = vld [vmem:[%s1 + $0x18] sm:$0xff]
      %v175 = vld [vmem:[%s165] sm:$0xff]
      %v176 = vld [vmem:[%s165 + $0x8] sm:$0xff]
      %v177 = vld [vmem:[%s165 + $0x10] sm:$0xff]
      %v178 = vld [vmem:[%s165 + $0x18] sm:$0xff]
      %v179 = vld [vmem:[%s2] sm:$0xff]
      %v180 = vld [vmem:[%s2 + $0x8] sm:$0xff]
      %v181 = vld [vmem:[%s2 + $0x10] sm:$0xff]
      %v182 = vld [vmem:[%s2 + $0x18] sm:$0xff]
      %184 = vset.pattern.permute.xlu0 0
      %185 = vperm.xlu0 %184, %v179
      %v186 = vpop.permute.xlu0 %185
      %189 = vset.pattern.permute.xlu0 0
      %190 = vperm.xlu0 %189, %v180
      %v191 = vpop.permute.xlu0 %190
      %194 = vset.pattern.permute.xlu0 0
      %195 = vperm.xlu0 %194, %v181
      %v196 = vpop.permute.xlu0 %195
      %199 = vset.pattern.permute.xlu0 0
      %200 = vperm.xlu0 %199, %v182
      %v201 = vpop.permute.xlu0 %200
      %vm203 = vcmask 261120
      %v205 = vsel %vm203, %v171, 0
      %v208 = vsel %vm203, %v172, 0
      %v211 = vsel %vm203, %v173, 0
      %v214 = vsel %vm203, %v174, 0
      %216 = vmatprep.subr.mxu0 0.0
      %217 = vmatpush1.msra.mxu0 %v175
      %218 = vmatprep.subr.mxu0 0.0
      %219 = vmatpush1.msra.mxu0 %v176
      %220 = vmatprep.subr.mxu0 0.0
      %221 = vmatpush1.msra.mxu0 %v177
      %222 = vmatprep.subr.mxu0 0.0
      %223 = vmatpush1.msra.mxu0 %v178
      %224 = vmatprep.subr.mxu0 0.0
      %225 = vmatpush1.msra.mxu0 0.0
      %226 = vmatprep.subr.mxu0 0.0
      %227 = vmatpush1.msra.mxu0 0.0
      %228 = vmatprep.subr.mxu0 0.0
      %229 = vmatpush1.msra.mxu0 0.0
      %230 = vmatprep.subr.mxu0 0.0
      %231 = vmatpush1.msra.mxu0 0.0
      %232 = vmatprep.subr.mxu0 0.0
      %233 = vmatpush1.msra.mxu0 0.0
      %234 = vmatprep.subr.mxu0 0.0
      %235 = vmatpush1.msra.mxu0 0.0
      %236 = vmatprep.subr.mxu0 0.0
      %237 = vmatpush1.msra.mxu0 0.0
      %238 = vmatprep.subr.mxu0 0.0
      %239 = vmatpush1.msra.mxu0 0.0
      %240 = vmatprep.subr.mxu0 0.0
      %241 = vmatpush1.msra.mxu0 0.0
      %242 = vmatprep.subr.mxu0 0.0
      %243 = vmatpush1.msra.mxu0 0.0
      %244 = vmatprep.subr.mxu0 0.0
      %245 = vmatpush1.msra.mxu0 0.0
      %246 = vmatprep.subr.mxu0 0.0
      %247 = vmatpush1.msra.mxu0 0.0
      %248 = vmatprep.subr.mxu0 0.0
      %249 = vmatpush1.msra.mxu0 0.0
      %250 = vmatprep.subr.mxu0 0.0
      %251 = vmatpush1.msra.mxu0 0.0
      %252 = vmatprep.subr.mxu0 0.0
      %253 = vmatpush1.msra.mxu0 0.0
      %254 = vmatprep.subr.mxu0 0.0
      %255 = vmatpush1.msra.mxu0 0.0
      %256 = vmatprep.subr.mxu0 0.0
      %257 = vmatpush1.msra.mxu0 0.0
      %258 = vmatprep.subr.mxu0 0.0
      %259 = vmatpush1.msra.mxu0 0.0
      %260 = vmatprep.subr.mxu0 0.0
      %261 = vmatpush1.msra.mxu0 0.0
      %262 = vmatprep.subr.mxu0 0.0
      %263 = vmatpush1.msra.mxu0 0.0
      %264 = vmatprep.subr.mxu0 0.0
      %265 = vmatpush1.msra.mxu0 0.0
      %266 = vmatprep.subr.mxu0 0.0
      %267 = vmatpush1.msra.mxu0 0.0
      %268 = vmatprep.subr.mxu0 0.0
      %269 = vmatpush1.msra.mxu0 0.0
      %270 = vmatprep.subr.mxu0 0.0
      %271 = vmatpush1.msra.mxu0 0.0
      %272 = vmatprep.subr.mxu0 0.0
      %273 = vmatpush1.msra.mxu0 0.0
      %274 = vmatprep.subr.mxu0 0.0
      %275 = vmatpush1.msra.mxu0 0.0
      %276 = vmatprep.subr.mxu0 0.0
      %277 = vmatpush1.msra.mxu0 0.0
      %278 = vmatprep.subr.mxu0 0.0
      %279 = vmatpush1.msra.mxu0 0.0
      %280 = vmatprep.mubr.f32.mxu0 0.0
      %281 = vmatmul.mubr.f32.gmra.mrb[0].mxu0 %v205
      %v282 = vpop.f32.mrb[0].mxu0
      %v283 = vadd.f32 %v186, %v282
      %v284 = vpop.f32.mrb[0].mxu0
      %285 = vmatprep.mubr.f32.mxu0 0.0
      %286 = vmatmul.mubr.f32.gmra.mrb[0].mxu0 %v208
      %v287 = vpop.f32.mrb[0].mxu0
      %v288 = vadd.f32 %v191, %v287
      %v289 = vpop.f32.mrb[0].mxu0
      %290 = vmatprep.mubr.f32.mxu0 0.0
      %291 = vmatmul.mubr.f32.gmra.mrb[0].mxu0 %v211
      %v292 = vpop.f32.mrb[0].mxu0
      %v293 = vadd.f32 %v196, %v292
      %v294 = vpop.f32.mrb[0].mxu0
      %295 = vmatprep.mubr.f32.mxu0 0.0
      %296 = vmatmul.mubr.f32.gmra.mrb[0].mxu0 %v214
      %v297 = vpop.f32.mrb[0].mxu0
      %v298 = vadd.f32 %v201, %v297
      %v299 = vpop.f32.mrb[0].mxu0
      %300 = vdwg.mxu0
      %vm301 = vcmask 523264
      %302 = vst.msk [vmem:[%s170] sm:$0xff] %vm301, %v283
      %303 = vst.msk [vmem:[%s170 + $0x8] sm:$0xff] %vm301, %v288
      %304 = vst.msk [vmem:[%s170 + $0x10] sm:$0xff] %vm301, %v293
      %305 = vst.msk [vmem:[%s170 + $0x18] sm:$0xff] %vm301, %v298
      %p306 = scmp.lt.s32.totalorder %s14, 1
      %s307 = scalar_select %p306, %s14, 1
      %s308 = smul.addr %s307, 4
      %s309 = smul.addr %s308, 8
      %s310 = scalar_lea.vmem %s3, %s309
      // Predicated region
      $region33: #{progressive_luong_attention.2} parent=31 // pred_check
        %p311 = pneg %p100
      $region34: #{progressive_luong_attention.2} parent=31 // pred_check_branch
        %313 = sbr.rel (%p311) target = $region36
      $region35: #{progressive_luong_attention.2} parent=31 // pred_region
        _
      $region36: #{progressive_luong_attention.2} parent=31 // pred_fallthru
        _
    $region32: #{progressive_luong_attention.2} parent=5 // pred_fallthru
      _
    %p314 = scmp.le.s32.totalorder 2, %s9
    // Predicated region
    $region37: #{progressive_luong_attention.2} parent=5 // pred_check
      %p315 = pneg %p314
    $region38: #{progressive_luong_attention.2} parent=5 // pred_check_branch
      %317 = sbr.rel (%p315) target = $region40
    $region39: #{progressive_luong_attention.2} parent=5 // pred_region
      %s318 = ssub.s32 %s9, 2
      // Predicated region
      $region41: #{progressive_luong_attention.2} parent=39 // pred_check
        %p319 = pneg %p106
      $region42: #{progressive_luong_attention.2} parent=39 // pred_check_branch
        %321 = sbr.rel (%p319) target = $region44
      $region43: #{progressive_luong_attention.2} parent=39 // pred_region
        %p322 = scmp.lt.s32.totalorder %s15, 1
        %s323 = scalar_select %p322, %s15, 1
        %s324 = smul.addr %s323, 4
        %s325 = smul.addr %s324, 8
        %s326 = scalar_lea.vmem %s3, %s325
      $region44: #{progressive_luong_attention.2} parent=39 // pred_fallthru
        _
    $region40: #{progressive_luong_attention.2} parent=5 // pred_fallthru
      _
  $region6: #{progressive_luong_attention.2} parent=0 // loop_footer
    %s13 = sadd.s32 1, %s9
  $region7: #{progressive_luong_attention.2} parent=0 // loop_footer_branch
    %8 = sbr.rel target = $region3
  $region8: #{progressive_luong_attention.2} parent=0 // loop_exit
    _

// kernel: progressive_luong_attention.3
$region0: #{progressive_luong_attention.3}
  #allocation0 [shape = 'u32[]', space=smem, size = 0x4, offset = 0x4, fixed_abs, tag = 'smem constant byte address 0x4 - core index']
  #allocation1 [shape = 'u32[144,128]{1,0:T(1,128)}', space=vmem, size = 0x12000, scoped, tag = 'internal scratch']
  #allocation2 [shape = 'f32[32,64]{1,0:T(8,128)}', space=vmem, size = 0x4000, scoped, tag = 'scratch operand']
  #allocation3 [shape = 'f32[64,32]{1,0:T(8,128)}', space=vmem, size = 0x8000, scoped, tag = 'scratch operand']
  #allocation4 [shape = 'f32[1]{0:T(128)S(6)}', space=smem, size = 0x200, scoped, tag = 'scoped memory for progressive_luong_attention.3']
  %s0 = inlined_call_operand.vmem [shape: f32[2,64,32], index: 0, kind: input, shape index: {}]
  %s1 = inlined_call_operand.vmem [shape: f32[2,32,64], index: 1, kind: input, shape index: {}]
  %s2 = inlined_call_operand.vmem [shape: f32[2,32,64], index: 2, kind: input, shape index: {}]
  %s3 = inlined_call_operand.vmem [shape: f32[64,32], index: 3, kind: input, shape index: {}]
  %s4 = inlined_call_operand.vmem [shape: f32[64,1], index: 4, kind: input, shape index: {}]
  %s5 = inlined_call_operand.<no memory space> [shape: f32[1], index: 5, kind: input, shape index: {}]
  %s6 = inlined_call_operand.vmem [shape: f32[2,32,64], index: 6, kind: output, shape index: {}]
  %s7 = sld [smem:[#allocation0]]
  $region61: #{progressive_luong_attention.3} parent=0
    _
  %s9 = ssub.s32 1, %s7
  %s10 = scalar_select 0, %s9, %s7
  %11 = sst [smem:[#allocation4]] %s5
  loop: start=0, step=1, limit=4
  $region2: #{progressive_luong_attention.3} parent=0 // loop_pre_header
    _
  $region3: #{progressive_luong_attention.3} parent=0 // loop_header
    %s13 = sphi 0, %s17
    %p14 = scmp.ge.s32.totalorder %s13, 4
    %s20 = sphi 0, %s32
    %s21 = sphi 0, %s28
    %s22 = sphi 0, %s20
    %s23 = sphi 0, %s21
    %s24 = sphi 0, %s22
    %s25 = sphi 0, %s23
    %s37 = sphi 0, %s39
    %s40 = sphi 0, %s37
    %s41 = sphi 0, %s40
    %s57 = sphi 0, %s41
    %s63 = sphi 0, %s65
    %s66 = sphi 0, %s63
    %s67 = sphi 0, %s66
    %s83 = sphi 0, %s67
    %s91 = sphi 0, %s93
    %s94 = sphi 0, %s91
    %s95 = sphi 0, %s94
    %s111 = sphi 0, %s95
    %s115 = sphi 0, %s115
    %s117 = sphi 0, %s115
    %s118 = sphi 0, %s117
    %s132 = sphi 0, %s118
    %s136 = sphi 0, %s136
    %s138 = sphi 0, %s136
    %s139 = sphi 0, %s138
    %s153 = sphi 0, %s139
    %s157 = sphi 0, %s157
    %s159 = sphi 0, %s157
    %s160 = sphi 0, %s159
    %s174 = sphi 0, %s160
    %s182 = sphi 0, %s184
    %s185 = sphi 0, %s182
    %s186 = sphi 0, %s185
    %s202 = sphi 0, %s186
  $region4: #{progressive_luong_attention.3} parent=0 // loop_header_branch
    %16 = sbr.rel (%p14) target = $region8
  $region5: #{progressive_luong_attention.3} parent=0 // loop_body
    %s18 = ssub.s32 %s13, 1
    %s19 = ssub.s32 %s13, 2
    %s26 = sadd.s32 1, %s21
    %p27 = scmp.ge.s32.totalorder %s26, 1
    %s28 = scalar_select %p27, 0, %s26
    %s29 = sadd.s32 1, %s20
    %s30 = scalar_select %p27, %s29, %s20
    %p31 = scmp.ge.s32.totalorder %s30, 2
    %s32 = scalar_select %p31, 0, %s30
    %s33 = ssub.s32 %s20, %s32
    %s34 = ssub.s32 %s21, %s28
    %s35 = sor.u32 %s33, %s34
    %p36 = scmp.eq.s32.totalorder %s35, 0
    %s38 = sadd.s32 %s37, 1
    %s39 = scalar_select %p36, %s37, %s38
    %p42 = pneg %p36
    %p43 = scmp.eq.s32.totalorder %s13, 1
    %p44 = por %p42, %p43
    %p45 = scmp.ne.s32.totalorder %s37, %s40
    %p46 = scmp.eq.s32.totalorder %s13, 0
    %p47 = por %p45, %p46
    %p48 = scmp.ne.s32.totalorder %s37, %s40
    %p49 = scmp.eq.s32.totalorder %s18, 1
    %p50 = por %p48, %p49
    %p51 = scmp.ne.s32.totalorder %s40, %s41
    %p52 = scmp.eq.s32.totalorder %s18, 0
    %p53 = por %p51, %p52
    %p54 = scmp.ne.s32.totalorder %s40, %s41
    %p55 = scmp.eq.s32.totalorder %s19, 1
    %p56 = por %p54, %p55
    %p58 = scmp.ne.s32.totalorder %s41, %s57
    %p59 = scmp.eq.s32.totalorder %s19, 0
    %p60 = por %p58, %p59
    %s61 = ssub.s32 %s20, %s32
    %p62 = scmp.eq.s32.totalorder %s61, 0
    %s64 = sadd.s32 %s63, 1
    %s65 = scalar_select %p62, %s63, %s64
    %p68 = pneg %p62
    %p69 = scmp.eq.s32.totalorder %s13, 1
    %p70 = por %p68, %p69
    %p71 = scmp.ne.s32.totalorder %s63, %s66
    %p72 = scmp.eq.s32.totalorder %s13, 0
    %p73 = por %p71, %p72
    %p74 = scmp.ne.s32.totalorder %s63, %s66
    %p75 = scmp.eq.s32.totalorder %s18, 1
    %p76 = por %p74, %p75
    %p77 = scmp.ne.s32.totalorder %s66, %s67
    %p78 = scmp.eq.s32.totalorder %s18, 0
    %p79 = por %p77, %p78
    %p80 = scmp.ne.s32.totalorder %s66, %s67
    %p81 = scmp.eq.s32.totalorder %s19, 1
    %p82 = por %p80, %p81
    %p84 = scmp.ne.s32.totalorder %s67, %s83
    %p85 = scmp.eq.s32.totalorder %s19, 0
    %p86 = por %p84, %p85
    %s87 = ssub.s32 %s20, %s32
    %s88 = ssub.s32 %s21, %s28
    %s89 = sor.u32 %s87, %s88
    %p90 = scmp.eq.s32.totalorder %s89, 0
    %s92 = sadd.s32 %s91, 1
    %s93 = scalar_select %p90, %s91, %s92
    %p96 = pneg %p90
    %p97 = scmp.eq.s32.totalorder %s13, 1
    %p98 = por %p96, %p97
    %p99 = scmp.ne.s32.totalorder %s91, %s94
    %p100 = scmp.eq.s32.totalorder %s13, 0
    %p101 = por %p99, %p100
    %p102 = scmp.ne.s32.totalorder %s91, %s94
    %p103 = scmp.eq.s32.totalorder %s18, 1
    %p104 = por %p102, %p103
    %p105 = scmp.ne.s32.totalorder %s94, %s95
    %p106 = scmp.eq.s32.totalorder %s18, 0
    %p107 = por %p105, %p106
    %p108 = scmp.ne.s32.totalorder %s94, %s95
    %p109 = scmp.eq.s32.totalorder %s19, 1
    %p110 = por %p108, %p109
    %p112 = scmp.ne.s32.totalorder %s95, %s111
    %p113 = scmp.eq.s32.totalorder %s19, 0
    %p114 = por %p112, %p113
    %s116 = sadd.s32 %s115, 1
    %p119 = scmp.eq.s32.totalorder %s13, 1
    %p120 = scmp.ne.s32.totalorder %s115, %s117
    %p121 = scmp.eq.s32.totalorder %s13, 0
    %p122 = por %p120, %p121
    %p123 = scmp.ne.s32.totalorder %s115, %s117
    %p124 = scmp.eq.s32.totalorder %s18, 1
    %p125 = por %p123, %p124
    %p126 = scmp.ne.s32.totalorder %s117, %s118
    %p127 = scmp.eq.s32.totalorder %s18, 0
    %p128 = por %p126, %p127
    %p129 = scmp.ne.s32.totalorder %s117, %s118
    %p130 = scmp.eq.s32.totalorder %s19, 1
    %p131 = por %p129, %p130
    %p133 = scmp.ne.s32.totalorder %s118, %s132
    %p134 = scmp.eq.s32.totalorder %s19, 0
    %p135 = por %p133, %p134
    %s137 = sadd.s32 %s136, 1
    %p140 = scmp.eq.s32.totalorder %s13, 1
    %p141 = scmp.ne.s32.totalorder %s136, %s138
    %p142 = scmp.eq.s32.totalorder %s13, 0
    %p143 = por %p141, %p142
    %p144 = scmp.ne.s32.totalorder %s136, %s138
    %p145 = scmp.eq.s32.totalorder %s18, 1
    %p146 = por %p144, %p145
    %p147 = scmp.ne.s32.totalorder %s138, %s139
    %p148 = scmp.eq.s32.totalorder %s18, 0
    %p149 = por %p147, %p148
    %p150 = scmp.ne.s32.totalorder %s138, %s139
    %p151 = scmp.eq.s32.totalorder %s19, 1
    %p152 = por %p150, %p151
    %p154 = scmp.ne.s32.totalorder %s139, %s153
    %p155 = scmp.eq.s32.totalorder %s19, 0
    %p156 = por %p154, %p155
    %s158 = sadd.s32 %s157, 1
    %p161 = scmp.eq.s32.totalorder %s13, 1
    %p162 = scmp.ne.s32.totalorder %s157, %s159
    %p163 = scmp.eq.s32.totalorder %s13, 0
    %p164 = por %p162, %p163
    %p165 = scmp.ne.s32.totalorder %s157, %s159
    %p166 = scmp.eq.s32.totalorder %s18, 1
    %p167 = por %p165, %p166
    %p168 = scmp.ne.s32.totalorder %s159, %s160
    %p169 = scmp.eq.s32.totalorder %s18, 0
    %p170 = por %p168, %p169
    %p171 = scmp.ne.s32.totalorder %s159, %s160
    %p172 = scmp.eq.s32.totalorder %s19, 1
    %p173 = por %p171, %p172
    %p175 = scmp.ne.s32.totalorder %s160, %s174
    %p176 = scmp.eq.s32.totalorder %s19, 0
    %p177 = por %p175, %p176
    %s178 = ssub.s32 %s20, %s32
    %s179 = ssub.s32 %s21, %s28
    %s180 = sor.u32 %s178, %s179
    %p181 = scmp.eq.s32.totalorder %s180, 0
    %s183 = sadd.s32 %s182, 1
    %s184 = scalar_select %p181, %s182, %s183
    %p187 = pneg %p181
    %p188 = scmp.eq.s32.totalorder %s13, 1
    %p189 = por %p187, %p188
    %p190 = scmp.ne.s32.totalorder %s182, %s185
    %p191 = scmp.eq.s32.totalorder %s13, 0
    %p192 = por %p190, %p191
    %p193 = scmp.ne.s32.totalorder %s182, %s185
    %p194 = scmp.eq.s32.totalorder %s18, 1
    %p195 = por %p193, %p194
    %p196 = scmp.ne.s32.totalorder %s185, %s186
    %p197 = scmp.eq.s32.totalorder %s18, 0
    %p198 = por %p196, %p197
    %p199 = scmp.ne.s32.totalorder %s185, %s186
    %p200 = scmp.eq.s32.totalorder %s19, 1
    %p201 = por %p199, %p200
    %p203 = scmp.ne.s32.totalorder %s186, %s202
    %p204 = scmp.eq.s32.totalorder %s19, 0
    %p205 = por %p203, %p204
    %p206 = scmp.le.s32.totalorder 1, %s13
    %p207 = scmp.lt.s32.totalorder %s13, 3
    %p208 = pnand %p206, %p207
    %p209 = pneg %p208
    // Predicated region
    $region9: #{progressive_luong_attention.3} parent=5 // pred_check
      _
    $region10: #{progressive_luong_attention.3} parent=5 // pred_check_branch
      %211 = sbr.rel (%p208) target = $region12
    $region11: #{progressive_luong_attention.3} parent=5 // pred_region
      %s212 = ssub.s32 %s13, 1
      // Predicated region
      $region13: #{progressive_luong_attention.3} parent=11 // pred_check
        %p213 = pneg %p128
      $region14: #{progressive_luong_attention.3} parent=11 // pred_check_branch
        %215 = sbr.rel (%p213) target = $region16
      $region15: #{progressive_luong_attention.3} parent=11 // pred_region
        _
      $region16: #{progressive_luong_attention.3} parent=11 // pred_fallthru
        _
      // Predicated region
      $region17: #{progressive_luong_attention.3} parent=11 // pred_check
        %p216 = pneg %p149
      $region18: #{progressive_luong_attention.3} parent=11 // pred_check_branch
        %218 = sbr.rel (%p216) target = $region20
      $region19: #{progressive_luong_attention.3} parent=11 // pred_region
        _
      $region20: #{progressive_luong_attention.3} parent=11 // pred_fallthru
        _
      // Predicated region
      $region21: #{progressive_luong_attention.3} parent=11 // pred_check
        %p219 = pneg %p170
      $region22: #{progressive_luong_attention.3} parent=11 // pred_check_branch
        %221 = sbr.rel (%p219) target = $region24
      $region23: #{progressive_luong_attention.3} parent=11 // pred_region
        _
      $region24: #{progressive_luong_attention.3} parent=11 // pred_fallthru
        _
    $region12: #{progressive_luong_attention.3} parent=5 // pred_fallthru
      _
    %p222 = scmp.lt.s32.totalorder %s13, 2
    // Predicated region
    $region25: #{progressive_luong_attention.3} parent=5 // pred_check
      %p223 = pneg %p222
    $region26: #{progressive_luong_attention.3} parent=5 // pred_check_branch
      %225 = sbr.rel (%p223) target = $region28
    $region27: #{progressive_luong_attention.3} parent=5 // pred_region
      // Predicated region
      $region29: #{progressive_luong_attention.3} parent=27 // pred_check
        %p226 = pneg %p47
      $region30: #{progressive_luong_attention.3} parent=27 // pred_check_branch
        %228 = sbr.rel (%p226) target = $region32
      $region31: #{progressive_luong_attention.3} parent=27 // pred_region
        %s229 = smul.u32 8, %s21
        %p230 = scmp.lt.s32.totalorder %s20, 1
        %s231 = scalar_select %p230, %s20, 1
        %p232 = scmp.lt.s32.totalorder %s229, 7
        %s233 = scalar_select %p232, %s229, 7
        %s234 = smul.addr %s231, 8
        %s235 = sadd.s32 %s233, %s234
        %s236 = smul.addr %s235, 8
        %s237 = scalar_lea.vmem %s0, %s236
        %s238 = smul.u32 8, %s21
      $region32: #{progressive_luong_attention.3} parent=27 // pred_fallthru
        _
      // Predicated region
      $region33: #{progressive_luong_attention.3} parent=27 // pred_check
        %p239 = pneg %p73
      $region34: #{progressive_luong_attention.3} parent=27 // pred_check_branch
        %241 = sbr.rel (%p239) target = $region36
      $region35: #{progressive_luong_attention.3} parent=27 // pred_region
        %p242 = scmp.lt.s32.totalorder %s20, 1
        %s243 = scalar_select %p242, %s20, 1
        %s244 = smul.addr %s243, 4
        %s245 = smul.addr %s244, 8
        %s246 = scalar_lea.vmem %s1, %s245
      $region36: #{progressive_luong_attention.3} parent=27 // pred_fallthru
        _
      // Predicated region
      $region37: #{progressive_luong_attention.3} parent=27 // pred_check
        %p247 = pneg %p101
      $region38: #{progressive_luong_attention.3} parent=27 // pred_check_branch
        %249 = sbr.rel (%p247) target = $region40
      $region39: #{progressive_luong_attention.3} parent=27 // pred_region
        %p250 = scmp.lt.s32.totalorder %s20, 1
        %s251 = scalar_select %p250, %s20, 1
        %p252 = scmp.lt.s32.totalorder %s21, 0
        %s253 = scalar_select %p252, %s21, 0
        %s254 = smul.addr %s251, 4
        %s255 = sadd.s32 %s253, %s254
        %s256 = smul.addr %s255, 8
        %s257 = scalar_lea.vmem %s2, %s256
      $region40: #{progressive_luong_attention.3} parent=27 // pred_fallthru
        _
    $region28: #{progressive_luong_attention.3} parent=5 // pred_fallthru
      _
    %p258 = scmp.le.s32.totalorder 1, %s13
    %p259 = scmp.lt.s32.totalorder %s13, 3
    %p260 = pnand %p258, %p259
    %p261 = pneg %p260
    // Predicated region
    $region41: #{progressive_luong_attention.3} parent=5 // pred_check
      _
    $region42: #{progressive_luong_attention.3} parent=5 // pred_check_branch
      %263 = sbr.rel (%p260) target = $region44
    $region43: #{progressive_luong_attention.3} parent=5 // pred_region
      %s264 = ssub.s32 %s13, 1
      %s265 = smul.u32 8, %s23
      %p266 = scmp.lt.s32.totalorder %s22, 1
      %s267 = scalar_select %p266, %s22, 1
      %p268 = scmp.lt.s32.totalorder %s265, 7
      %s269 = scalar_select %p268, %s265, 7
      %s270 = smul.addr %s267, 8
      %s271 = sadd.s32 %s269, %s270
      %s272 = smul.addr %s271, 8
      %s273 = scalar_lea.vmem %s0, %s272
      %p274 = pneg %p53
      %p275 = pneg %p50
      %p276 = scmp.lt.s32.totalorder %s22, 1
      %s277 = scalar_select %p276, %s22, 1
      %s278 = smul.addr %s277, 4
      %s279 = smul.addr %s278, 8
      %s280 = scalar_lea.vmem %s1, %s279
      %p281 = pneg %p79
      %p282 = pneg %p76
      %p283 = scmp.lt.s32.totalorder %s22, 1
      %s284 = scalar_select %p283, %s22, 1
      %p285 = scmp.lt.s32.totalorder %s23, 0
      %s286 = scalar_select %p285, %s23, 0
      %s287 = smul.addr %s284, 4
      %s288 = sadd.s32 %s286, %s287
      %s289 = smul.addr %s288, 8
      %s290 = scalar_lea.vmem %s2, %s289
      %p291 = pneg %p107
      %p292 = pneg %p104
      %p293 = pneg %p128
      %p294 = pneg %p125
      %p295 = pneg %p149
      %p296 = pneg %p146
      %p297 = pneg %p170
      %p298 = pneg %p167
      %p299 = pneg %p198
      %p300 = pneg %p195
      %p301 = scmp.lt.s32.totalorder %s22, 1
      %s302 = scalar_select %p301, %s22, 1
      %p303 = scmp.lt.s32.totalorder %s23, 0
      %s304 = scalar_select %p303, %s23, 0
      %s305 = smul.addr %s302, 4
      %s306 = sadd.s32 %s304, %s305
      %s307 = smul.addr %s306, 8
      %s308 = scalar_lea.vmem %s6, %s307
      %s309 = smul.u32 8, %s23
      %p310 = scmp.lt.s32.totalorder %s22, 1
      %s311 = scalar_select %p310, %s22, 1
      %p312 = scmp.lt.s32.totalorder %s309, 7
      %s313 = scalar_select %p312, %s309, 7
      %s314 = smul.addr %s311, 8
      %s315 = sadd.s32 %s313, %s314
      %s316 = smul.addr %s315, 8
      %s317 = scalar_lea.vmem %s0, %s316
      %s318 = smul.u32 8, %s23
      %p319 = scmp.lt.s32.totalorder %s22, 1
      %s320 = scalar_select %p319, %s22, 1
      %s321 = smul.addr %s320, 4
      %s322 = smul.addr %s321, 8
      %s323 = scalar_lea.vmem %s1, %s322
      %p324 = scmp.lt.s32.totalorder %s22, 1
      %s325 = scalar_select %p324, %s22, 1
      %p326 = scmp.lt.s32.totalorder %s23, 0
      %s327 = scalar_select %p326, %s23, 0
      %s328 = smul.addr %s325, 4
      %s329 = sadd.s32 %s327, %s328
      %s330 = smul.addr %s329, 8
      %s331 = scalar_lea.vmem %s2, %s330
      %p332 = scmp.lt.s32.totalorder %s22, 1
      %s333 = scalar_select %p332, %s22, 1
      %p334 = scmp.lt.s32.totalorder %s23, 0
      %s335 = scalar_select %p334, %s23, 0
      %s336 = smul.addr %s333, 4
      %s337 = sadd.s32 %s335, %s336
      %s338 = smul.addr %s337, 8
      %s339 = scalar_lea.vmem %s6, %s338
      %p340 = scmp.eq.s32.totalorder %s23, 0
      // Predicated region
      $region45: #{progressive_luong_attention.3} parent=43 // pred_check
        %p341 = pneg %p340
      $region46: #{progressive_luong_attention.3} parent=43 // pred_check_branch
        %343 = sbr.rel (%p341) target = $region48
      $region47: #{progressive_luong_attention.3} parent=43 // pred_region
        %v344 = vld [vmem:[%s3] sm:$0xff]
        %v345 = vld [vmem:[%s3 + $0x8] sm:$0xff]
        %v346 = vld [vmem:[%s3 + $0x10] sm:$0xff]
        %v347 = vld [vmem:[%s3 + $0x18] sm:$0xff]
        %v348 = vld [vmem:[%s3 + $0x20] sm:$0xff]
        %v349 = vld [vmem:[%s3 + $0x28] sm:$0xff]
        %v350 = vld [vmem:[%s3 + $0x30] sm:$0xff]
        %v351 = vld [vmem:[%s3 + $0x38] sm:$0xff]
        %v352 = vld [vmem:[%s323] sm:$0xff]
        %v353 = vld [vmem:[%s323 + $0x8] sm:$0xff]
        %v354 = vld [vmem:[%s323 + $0x10] sm:$0xff]
        %v355 = vld [vmem:[%s323 + $0x18] sm:$0xff]
        %v356 = vld [vmem:[%s4] sm:$0xff]
        %v357 = vld [vmem:[%s4 + $0x8] sm:$0xff]
        %v358 = vld [vmem:[%s4 + $0x10] sm:$0xff]
        %v359 = vld [vmem:[%s4 + $0x18] sm:$0xff]
        %v360 = vld [vmem:[%s4 + $0x20] sm:$0xff]
        %v361 = vld [vmem:[%s4 + $0x28] sm:$0xff]
        %v362 = vld [vmem:[%s4 + $0x30] sm:$0xff]
        %v363 = vld [vmem:[%s4 + $0x38] sm:$0xff]
        %365 = vset.pattern.permute.xlu0 0
        %366 = vperm.xlu0 %365, %v356
        %v367 = vpop.permute.xlu0 %366
        %370 = vset.pattern.permute.xlu0 0
        %371 = vperm.xlu0 %370, %v357
        %v372 = vpop.permute.xlu0 %371
        %375 = vset.pattern.permute.xlu0 0
        %376 = vperm.xlu0 %375, %v358
        %v377 = vpop.permute.xlu0 %376
        %380 = vset.pattern.permute.xlu0 0
        %381 = vperm.xlu0 %380, %v359
        %v382 = vpop.permute.xlu0 %381
        %385 = vset.pattern.permute.xlu0 0
        %386 = vperm.xlu0 %385, %v360
        %v387 = vpop.permute.xlu0 %386
        %390 = vset.pattern.permute.xlu0 0
        %391 = vperm.xlu0 %390, %v361
        %v392 = vpop.permute.xlu0 %391
        %395 = vset.pattern.permute.xlu0 0
        %396 = vperm.xlu0 %395, %v362
        %v397 = vpop.permute.xlu0 %396
        %400 = vset.pattern.permute.xlu0 0
        %401 = vperm.xlu0 %400, %v363
        %v402 = vpop.permute.xlu0 %401
        %vm404 = vcmask 261120
        %v406 = vsel %vm404, %v344, 0
        %v409 = vsel %vm404, %v345, 0
        %v412 = vsel %vm404, %v346, 0
        %v415 = vsel %vm404, %v347, 0
        %v418 = vsel %vm404, %v348, 0
        %v421 = vsel %vm404, %v349, 0
        %v424 = vsel %vm404, %v350, 0
        %v427 = vsel %vm404, %v351, 0
        %429 = vmatprep.subr.mxu0 0.0
        %430 = vmatpush1.msra.mxu0 %v352
        %431 = vmatprep.subr.mxu0 0.0
        %432 = vmatpush1.msra.mxu0 %v353
        %433 = vmatprep.subr.mxu0 0.0
        %434 = vmatpush1.msra.mxu0 %v354
        %435 = vmatprep.subr.mxu0 0.0
        %436 = vmatpush1.msra.mxu0 %v355
        %437 = vmatprep.subr.mxu0 0.0
        %438 = vmatpush1.msra.mxu0 0.0
        %439 = vmatprep.subr.mxu0 0.0
        %440 = vmatpush1.msra.mxu0 0.0
        %441 = vmatprep.subr.mxu0 0.0
        %442 = vmatpush1.msra.mxu0 0.0
        %443 = vmatprep.subr.mxu0 0.0
        %444 = vmatpush1.msra.mxu0 0.0
        %445 = vmatprep.subr.mxu0 0.0
        %446 = vmatpush1.msra.mxu0 0.0
        %447 = vmatprep.subr.mxu0 0.0
        %448 = vmatpush1.msra.mxu0 0.0
        %449 = vmatprep.subr.mxu0 0.0
        %450 = vmatpush1.msra.mxu0 0.0
        %451 = vmatprep.subr.mxu0 0.0
        %452 = vmatpush1.msra.mxu0 0.0
        %453 = vmatprep.subr.mxu0 0.0
        %454 = vmatpush1.msra.mxu0 0.0
        %455 = vmatprep.subr.mxu0 0.0
        %456 = vmatpush1.msra.mxu0 0.0
        %457 = vmatprep.subr.mxu0 0.0
        %458 = vmatpush1.msra.mxu0 0.0
        %459 = vmatprep.subr.mxu0 0.0
        %460 = vmatpush1.msra.mxu0 0.0
        %461 = vmatprep.subr.mxu0 0.0
        %462 = vmatpush1.msra.mxu0 0.0
        %463 = vmatprep.subr.mxu0 0.0
        %464 = vmatpush1.msra.mxu0 0.0
        %465 = vmatprep.subr.mxu0 0.0
        %466 = vmatpush1.msra.mxu0 0.0
        %467 = vmatprep.subr.mxu0 0.0
        %468 = vmatpush1.msra.mxu0 0.0
        %469 = vmatprep.subr.mxu0 0.0
        %470 = vmatpush1.msra.mxu0 0.0
        %471 = vmatprep.subr.mxu0 0.0
        %472 = vmatpush1.msra.mxu0 0.0
        %473 = vmatprep.subr.mxu0 0.0
        %474 = vmatpush1.msra.mxu0 0.0
        %475 = vmatprep.subr.mxu0 0.0
        %476 = vmatpush1.msra.mxu0 0.0
        %477 = vmatprep.subr.mxu0 0.0
        %478 = vmatpush1.msra.mxu0 0.0
        %479 = vmatprep.subr.mxu0 0.0
        %480 = vmatpush1.msra.mxu0 0.0
        %481 = vmatprep.subr.mxu0 0.0
        %482 = vmatpush1.msra.mxu0 0.0
        %483 = vmatprep.subr.mxu0 0.0
        %484 = vmatpush1.msra.mxu0 0.0
        %485 = vmatprep.subr.mxu0 0.0
        %486 = vmatpush1.msra.mxu0 0.0
        %487 = vmatprep.subr.mxu0 0.0
        %488 = vmatpush1.msra.mxu0 0.0
        %489 = vmatprep.subr.mxu0 0.0
        %490 = vmatpush1.msra.mxu0 0.0
        %491 = vmatprep.subr.mxu0 0.0
        %492 = vmatpush1.msra.mxu0 0.0
        %493 = vmatprep.mubr.f32.mxu0 0.0
        %494 = vmatmul.mubr.f32.gmra.mrb[0].mxu0 %v406
        %v495 = vpop.f32.mrb[0].mxu0
        %v496 = vadd.f32 %v367, %v495
        %v497 = vpop.f32.mrb[0].mxu0
        %498 = vmatprep.mubr.f32.mxu0 0.0
        %499 = vmatmul.mubr.f32.gmra.mrb[0].mxu0 %v409
        %v500 = vpop.f32.mrb[0].mxu0
        %v501 = vadd.f32 %v372, %v500
        %v502 = vpop.f32.mrb[0].mxu0
        %503 = vmatprep.mubr.f32.mxu0 0.0
        %504 = vmatmul.mubr.f32.gmra.mrb[0].mxu0 %v412
        %v505 = vpop.f32.mrb[0].mxu0
        %v506 = vadd.f32 %v377, %v505
        %v507 = vpop.f32.mrb[0].mxu0
        %508 = vmatprep.mubr.f32.mxu0 0.0
        %509 = vmatmul.mubr.f32.gmra.mrb[0].mxu0 %v415
        %v510 = vpop.f32.mrb[0].mxu0
        %v511 = vadd.f32 %v382, %v510
        %v512 = vpop.f32.mrb[0].mxu0
        %513 = vmatprep.mubr.f32.mxu0 0.0
        %514 = vmatmul.mubr.f32.gmra.mrb[0].mxu0 %v418
        %v515 = vpop.f32.mrb[0].mxu0
        %v516 = vadd.f32 %v387, %v515
        %v517 = vpop.f32.mrb[0].mxu0
        %518 = vmatprep.mubr.f32.mxu0 0.0
        %519 = vmatmul.mubr.f32.gmra.mrb[0].mxu0 %v421
        %v520 = vpop.f32.mrb[0].mxu0
        %v521 = vadd.f32 %v392, %v520
        %v522 = vpop.f32.mrb[0].mxu0
        %523 = vmatprep.mubr.f32.mxu0 0.0
        %524 = vmatmul.mubr.f32.gmra.mrb[0].mxu0 %v424
        %v525 = vpop.f32.mrb[0].mxu0
        %v526 = vadd.f32 %v397, %v525
        %v527 = vpop.f32.mrb[0].mxu0
        %528 = vmatprep.mubr.f32.mxu0 0.0
        %529 = vmatmul.mubr.f32.gmra.mrb[0].mxu0 %v427
        %v530 = vpop.f32.mrb[0].mxu0
        %v531 = vadd.f32 %v402, %v530
        %v532 = vpop.f32.mrb[0].mxu0
        %533 = vdwg.mxu0
        %vm534 = vcmask 523264
        %535 = vst.msk [vmem:[#allocation2] sm:$0xff] %vm534, %v496
        %536 = vst.msk [vmem:[#allocation2 + $0x8] sm:$0xff] %vm534, %v501
        %537 = vst.msk [vmem:[#allocation2 + $0x10] sm:$0xff] %vm534, %v506
        %538 = vst.msk [vmem:[#allocation2 + $0x18] sm:$0xff] %vm534, %v511
        %539 = vxpose.xlu0.b32.start [1/16] %v516, 128
        %540 = vxpose.xlu0.b32.cont [2/16] %v521, 128
        %541 = vxpose.xlu0.b32.cont [3/16] %v526, 128
        %542 = vxpose.xlu0.b32.cont [4/16] %v531, 128
        %543 = vxpose.xlu0.b32.cont [5/16] 0.0, 128
        %544 = vxpose.xlu0.b32.cont [6/16] 0.0, 128
        %545 = vxpose.xlu0.b32.cont [7/16] 0.0, 128
        %546 = vxpose.xlu0.b32.cont [8/16] 0.0, 128
        %547 = vxpose.xlu0.b32.cont [9/16] 0.0, 128
        %548 = vxpose.xlu0.b32.cont [10/16] 0.0, 128
        %549 = vxpose.xlu0.b32.cont [11/16] 0.0, 128
        %550 = vxpose.xlu0.b32.cont [12/16] 0.0, 128
        %551 = vxpose.xlu0.b32.cont [13/16] 0.0, 128
        %552 = vxpose.xlu0.b32.cont [14/16] 0.0, 128
        %553 = vxpose.xlu0.b32.cont [15/16] 0.0, 128
        %554 = vxpose.xlu0.b32.end [16/16] 0.0, 128
        %v555 = vpop.trf.xlu0
        %v556 = vpop.trf.xlu0
        %v557 = vpop.trf.xlu0
        %v558 = vpop.trf.xlu0
        %v559 = vpop.trf.xlu0
        %v560 = vpop.trf.xlu0
        %v561 = vpop.trf.xlu0
        %v562 = vpop.trf.xlu0
        %v563 = vpop.trf.xlu0
        %v564 = vpop.trf.xlu0
        %v565 = vpop.trf.xlu0
        %v566 = vpop.trf.xlu0
        %v567 = vpop.trf.xlu0
        %v568 = vpop.trf.xlu0
        %v569 = vpop.trf.xlu0
        %v570 = vpop.trf.xlu0
        %571 = vst.msk [vmem:[#allocation3] sm:$0xff] %vm404, %v555
        %572 = vst.msk [vmem:[#allocation3 + $0x8] sm:$0xff] %vm404, %v556
        %573 = vst.msk [vmem:[#allocation3 + $0x10] sm:$0xff] %vm404, %v557
        %574 = vst.msk [vmem:[#allocation3 + $0x18] sm:$0xff] %vm404, %v558
        %575 = vst.msk [vmem:[#allocation3 + $0x20] sm:$0xff] %vm404, %v559
        %576 = vst.msk [vmem:[#allocation3 + $0x28] sm:$0xff] %vm404, %v560
        %577 = vst.msk [vmem:[#allocation3 + $0x30] sm:$0xff] %vm404, %v561
        %578 = vst.msk [vmem:[#allocation3 + $0x38] sm:$0xff] %vm404, %v562
      $region48: #{progressive_luong_attention.3} parent=43 // pred_fallthru
        _
      %v579 = vld [vmem:[%s317] sm:$0xff]
      %v580 = vld [vmem:[%s317 + $0x8] sm:$0xff]
      %v581 = vld [vmem:[%s317 + $0x10] sm:$0xff]
      %v582 = vld [vmem:[%s317 + $0x18] sm:$0xff]
      %v583 = vld [vmem:[%s317 + $0x20] sm:$0xff]
      %v584 = vld [vmem:[%s317 + $0x28] sm:$0xff]
      %v585 = vld [vmem:[%s317 + $0x30] sm:$0xff]
      %v586 = vld [vmem:[%s317 + $0x38] sm:$0xff]
      %v587 = vld [vmem:[#allocation2] sm:$0xff]
      %v588 = vld [vmem:[#allocation2 + $0x8] sm:$0xff]
      %v589 = vld [vmem:[#allocation2 + $0x10] sm:$0xff]
      %v590 = vld [vmem:[#allocation2 + $0x18] sm:$0xff]
      %vm591 = vcmask 261120
      %v593 = vsel %vm591, %v579, 0
      %v596 = vsel %vm591, %v580, 0
      %v599 = vsel %vm591, %v581, 0
      %v602 = vsel %vm591, %v582, 0
      %v605 = vsel %vm591, %v583, 0
      %v608 = vsel %vm591, %v584, 0
      %v611 = vsel %vm591, %v585, 0
      %v614 = vsel %vm591, %v586, 0
      %616 = vmatprep.subr.mxu0 0.0
      %617 = vmatpush1.msra.mxu0 %v587
      %618 = vmatprep.subr.mxu0 0.0
      %619 = vmatpush1.msra.mxu0 %v588
      %620 = vmatprep.subr.mxu0 0.0
      %621 = vmatpush1.msra.mxu0 %v589
      %622 = vmatprep.subr.mxu0 0.0
      %623 = vmatpush1.msra.mxu0 %v590
      %624 = vmatprep.subr.mxu0 0.0
      %625 = vmatpush1.msra.mxu0 0.0
      %626 = vmatprep.subr.mxu0 0.0
      %627 = vmatpush1.msra.mxu0 0.0
      %628 = vmatprep.subr.mxu0 0.0
      %629 = vmatpush1.msra.mxu0 0.0
      %630 = vmatprep.subr.mxu0 0.0
      %631 = vmatpush1.msra.mxu0 0.0
      %632 = vmatprep.subr.mxu0 0.0
      %633 = vmatpush1.msra.mxu0 0.0
      %634 = vmatprep.subr.mxu0 0.0
      %635 = vmatpush1.msra.mxu0 0.0
      %636 = vmatprep.subr.mxu0 0.0
      %637 = vmatpush1.msra.mxu0 0.0
      %638 = vmatprep.subr.mxu0 0.0
      %639 = vmatpush1.msra.mxu0 0.0
      %640 = vmatprep.subr.mxu0 0.0
      %641 = vmatpush1.msra.mxu0 0.0
      %642 = vmatprep.subr.mxu0 0.0
      %643 = vmatpush1.msra.mxu0 0.0
      %644 = vmatprep.subr.mxu0 0.0
      %645 = vmatpush1.msra.mxu0 0.0
      %646 = vmatprep.subr.mxu0 0.0
      %647 = vmatpush1.msra.mxu0 0.0
      %648 = vmatprep.subr.mxu0 0.0
      %649 = vmatpush1.msra.mxu0 0.0
      %650 = vmatprep.subr.mxu0 0.0
      %651 = vmatpush1.msra.mxu0 0.0
      %652 = vmatprep.subr.mxu0 0.0
      %653 = vmatpush1.msra.mxu0 0.0
      %654 = vmatprep.subr.mxu0 0.0
      %655 = vmatpush1.msra.mxu0 0.0
      %656 = vmatprep.subr.mxu0 0.0
      %657 = vmatpush1.msra.mxu0 0.0
      %658 = vmatprep.subr.mxu0 0.0
      %659 = vmatpush1.msra.mxu0 0.0
      %660 = vmatprep.subr.mxu0 0.0
      %661 = vmatpush1.msra.mxu0 0.0
      %662 = vmatprep.subr.mxu0 0.0
      %663 = vmatpush1.msra.mxu0 0.0
      %664 = vmatprep.subr.mxu0 0.0
      %665 = vmatpush1.msra.mxu0 0.0
      %666 = vmatprep.subr.mxu0 0.0
      %667 = vmatpush1.msra.mxu0 0.0
      %668 = vmatprep.subr.mxu0 0.0
      %669 = vmatpush1.msra.mxu0 0.0
      %670 = vmatprep.subr.mxu0 0.0
      %671 = vmatpush1.msra.mxu0 0.0
      %672 = vmatprep.subr.mxu0 0.0
      %673 = vmatpush1.msra.mxu0 0.0
      %674 = vmatprep.subr.mxu0 0.0
      %675 = vmatpush1.msra.mxu0 0.0
      %676 = vmatprep.subr.mxu0 0.0
      %677 = vmatpush1.msra.mxu0 0.0
      %678 = vmatprep.subr.mxu0 0.0
      %679 = vmatpush1.msra.mxu0 0.0
      %680 = vmatprep.mubr.f32.mxu0 0.0
      %681 = vmatmul.mubr.f32.gmra.mrb[0].mxu0 %v593
      %v682 = vpop.f32.mrb[0].mxu0
      %v683 = vadd.f32 0.0, %v682
      %v684 = vpop.f32.mrb[0].mxu0
      %685 = vmatprep.mubr.f32.mxu0 0.0
      %686 = vmatmul.mubr.f32.gmra.mrb[0].mxu0 %v596
      %v687 = vpop.f32.mrb[0].mxu0
      %v688 = vadd.f32 0.0, %v687
      %v689 = vpop.f32.mrb[0].mxu0
      %690 = vmatprep.mubr.f32.mxu0 0.0
      %691 = vmatmul.mubr.f32.gmra.mrb[0].mxu0 %v599
      %v692 = vpop.f32.mrb[0].mxu0
      %v693 = vadd.f32 0.0, %v692
      %v694 = vpop.f32.mrb[0].mxu0
      %695 = vmatprep.mubr.f32.mxu0 0.0
      %696 = vmatmul.mubr.f32.gmra.mrb[0].mxu0 %v602
      %v697 = vpop.f32.mrb[0].mxu0
      %v698 = vadd.f32 0.0, %v697
      %v699 = vpop.f32.mrb[0].mxu0
      %700 = vmatprep.mubr.f32.mxu0 0.0
      %701 = vmatmul.mubr.f32.gmra.mrb[0].mxu0 %v605
      %v702 = vpop.f32.mrb[0].mxu0
      %v703 = vadd.f32 0.0, %v702
      %v704 = vpop.f32.mrb[0].mxu0
      %705 = vmatprep.mubr.f32.mxu0 0.0
      %706 = vmatmul.mubr.f32.gmra.mrb[0].mxu0 %v608
      %v707 = vpop.f32.mrb[0].mxu0
      %v708 = vadd.f32 0.0, %v707
      %v709 = vpop.f32.mrb[0].mxu0
      %710 = vmatprep.mubr.f32.mxu0 0.0
      %711 = vmatmul.mubr.f32.gmra.mrb[0].mxu0 %v611
      %v712 = vpop.f32.mrb[0].mxu0
      %v713 = vadd.f32 0.0, %v712
      %v714 = vpop.f32.mrb[0].mxu0
      %715 = vmatprep.mubr.f32.mxu0 0.0
      %716 = vmatmul.mubr.f32.gmra.mrb[0].mxu0 %v614
      %v717 = vpop.f32.mrb[0].mxu0
      %v718 = vadd.f32 0.0, %v717
      %v719 = vpop.f32.mrb[0].mxu0
      %720 = vdwg.mxu0
      %vm721 = vcmask 523264
      %v722 = vsel %vm721, %v683, -inf
      %723 = vmax.xlane.f32.xlu0 %v722
      %v724 = vpop.xlane.xlu0 %723
      %v725 = vsel %vm721, %v688, -inf
      %726 = vmax.xlane.f32.xlu0 %v725
      %v727 = vpop.xlane.xlu0 %726
      %v728 = vsel %vm721, %v693, -inf
      %729 = vmax.xlane.f32.xlu0 %v728
      %v730 = vpop.xlane.xlu0 %729
      %v731 = vsel %vm721, %v698, -inf
      %732 = vmax.xlane.f32.xlu0 %v731
      %v733 = vpop.xlane.xlu0 %732
      %v734 = vsel %vm721, %v703, -inf
      %735 = vmax.xlane.f32.xlu0 %v734
      %v736 = vpop.xlane.xlu0 %735
      %v737 = vsel %vm721, %v708, -inf
      %738 = vmax.xlane.f32.xlu0 %v737
      %v739 = vpop.xlane.xlu0 %738
      %v740 = vsel %vm721, %v713, -inf
      %741 = vmax.xlane.f32.xlu0 %v740
      %v742 = vpop.xlane.xlu0 %741
      %v743 = vsel %vm721, %v718, -inf
      %744 = vmax.xlane.f32.xlu0 %v743
      %v745 = vpop.xlane.xlu0 %744
      %v746 = vsub.f32 %v683, %v724
      %v747 = vsub.f32 %v688, %v727
      %v748 = vsub.f32 %v693, %v730
      %v749 = vsub.f32 %v698, %v733
      %v750 = vsub.f32 %v703, %v736
      %v751 = vsub.f32 %v708, %v739
      %v752 = vsub.f32 %v713, %v742
      %v753 = vsub.f32 %v718, %v745
      %v754 = vmul.f32 %v746, 1.442695
      %v755 = vpow.pop %v754
      %v756 = vmul.f32 %v747, 1.442695
      %v757 = vpow.pop %v756
      %v758 = vmul.f32 %v748, 1.442695
      %v759 = vpow.pop %v758
      %v760 = vmul.f32 %v749, 1.442695
      %v761 = vpow.pop %v760
      %v762 = vmul.f32 %v750, 1.442695
      %v763 = vpow.pop %v762
      %v764 = vmul.f32 %v751, 1.442695
      %v765 = vpow.pop %v764
      %v766 = vmul.f32 %v752, 1.442695
      %v767 = vpow.pop %v766
      %v768 = vmul.f32 %v753, 1.442695
      %v769 = vpow.pop %v768
      %v770 = vsel %vm721, %v755, 0.0
      %771 = vadd.xlane.f32.xlu0 %v770
      %v772 = vpop.xlane.xlu0 %771
      %v773 = vsel %vm721, %v757, 0.0
      %774 = vadd.xlane.f32.xlu0 %v773
      %v775 = vpop.xlane.xlu0 %774
      %v776 = vsel %vm721, %v759, 0.0
      %777 = vadd.xlane.f32.xlu0 %v776
      %v778 = vpop.xlane.xlu0 %777
      %v779 = vsel %vm721, %v761, 0.0
      %780 = vadd.xlane.f32.xlu0 %v779
      %v781 = vpop.xlane.xlu0 %780
      %v782 = vsel %vm721, %v763, 0.0
      %783 = vadd.xlane.f32.xlu0 %v782
      %v784 = vpop.xlane.xlu0 %783
      %v785 = vsel %vm721, %v765, 0.0
      %786 = vadd.xlane.f32.xlu0 %v785
      %v787 = vpop.xlane.xlu0 %786
      %v788 = vsel %vm721, %v767, 0.0
      %789 = vadd.xlane.f32.xlu0 %v788
      %v790 = vpop.xlane.xlu0 %789
      %v791 = vsel %vm721, %v769, 0.0
      %792 = vadd.xlane.f32.xlu0 %v791
      %v793 = vpop.xlane.xlu0 %792
      %v794 = vrcp.pop %v772
      %v795 = vrcp.pop %v775
      %v796 = vrcp.pop %v778
      %v797 = vrcp.pop %v781
      %v798 = vrcp.pop %v784
      %v799 = vrcp.pop %v787
      %v800 = vrcp.pop %v790
      %v801 = vrcp.pop %v793
      %v802 = vmul.f32 %v755, %v794
      %v803 = vmul.f32 %v757, %v795
      %v804 = vmul.f32 %v759, %v796
      %v805 = vmul.f32 %v761, %v797
      %v806 = vmul.f32 %v763, %v798
      %v807 = vmul.f32 %v765, %v799
      %v808 = vmul.f32 %v767, %v800
      %v809 = vmul.f32 %v769, %v801
      %v810 = vld [vmem:[#allocation3] sm:$0xff]
      %v811 = vld [vmem:[#allocation3 + $0x8] sm:$0xff]
      %v812 = vld [vmem:[#allocation3 + $0x10] sm:$0xff]
      %v813 = vld [vmem:[#allocation3 + $0x18] sm:$0xff]
      %v814 = vld [vmem:[#allocation3 + $0x20] sm:$0xff]
      %v815 = vld [vmem:[#allocation3 + $0x28] sm:$0xff]
      %v816 = vld [vmem:[#allocation3 + $0x30] sm:$0xff]
      %v817 = vld [vmem:[#allocation3 + $0x38] sm:$0xff]
      %v819 = vsel %vm721, %v802, 0
      %v822 = vsel %vm721, %v803, 0
      %v825 = vsel %vm721, %v804, 0
      %v828 = vsel %vm721, %v805, 0
      %v831 = vsel %vm721, %v806, 0
      %v834 = vsel %vm721, %v807, 0
      %v837 = vsel %vm721, %v808, 0
      %v840 = vsel %vm721, %v809, 0
      %842 = vmatprep.subr.mxu0 0.0
      %843 = vmatpush1.msra.mxu0 %v810
      %844 = vmatprep.subr.mxu0 0.0
      %845 = vmatpush1.msra.mxu0 %v811
      %846 = vmatprep.subr.mxu0 0.0
      %847 = vmatpush1.msra.mxu0 %v812
      %848 = vmatprep.subr.mxu0 0.0
      %849 = vmatpush1.msra.mxu0 %v813
      %850 = vmatprep.subr.mxu0 0.0
      %851 = vmatpush1.msra.mxu0 %v814
      %852 = vmatprep.subr.mxu0 0.0
      %853 = vmatpush1.msra.mxu0 %v815
      %854 = vmatprep.subr.mxu0 0.0
      %855 = vmatpush1.msra.mxu0 %v816
      %856 = vmatprep.subr.mxu0 0.0
      %857 = vmatpush1.msra.mxu0 %v817
      %858 = vmatprep.subr.mxu0 0.0
      %859 = vmatpush1.msra.mxu0 0.0
      %860 = vmatprep.subr.mxu0 0.0
      %861 = vmatpush1.msra.mxu0 0.0
      %862 = vmatprep.subr.mxu0 0.0
      %863 = vmatpush1.msra.mxu0 0.0
      %864 = vmatprep.subr.mxu0 0.0
      %865 = vmatpush1.msra.mxu0 0.0
      %866 = vmatprep.subr.mxu0 0.0
      %867 = vmatpush1.msra.mxu0 0.0
      %868 = vmatprep.subr.mxu0 0.0
      %869 = vmatpush1.msra.mxu0 0.0
      %870 = vmatprep.subr.mxu0 0.0
      %871 = vmatpush1.msra.mxu0 0.0
      %872 = vmatprep.subr.mxu0 0.0
      %873 = vmatpush1.msra.mxu0 0.0
      %874 = vmatprep.subr.mxu0 0.0
      %875 = vmatpush1.msra.mxu0 0.0
      %876 = vmatprep.subr.mxu0 0.0
      %877 = vmatpush1.msra.mxu0 0.0
      %878 = vmatprep.subr.mxu0 0.0
      %879 = vmatpush1.msra.mxu0 0.0
      %880 = vmatprep.subr.mxu0 0.0
      %881 = vmatpush1.msra.mxu0 0.0
      %882 = vmatprep.subr.mxu0 0.0
      %883 = vmatpush1.msra.mxu0 0.0
      %884 = vmatprep.subr.mxu0 0.0
      %885 = vmatpush1.msra.mxu0 0.0
      %886 = vmatprep.subr.mxu0 0.0
      %887 = vmatpush1.msra.mxu0 0.0
      %888 = vmatprep.subr.mxu0 0.0
      %889 = vmatpush1.msra.mxu0 0.0
      %890 = vmatprep.subr.mxu0 0.0
      %891 = vmatpush1.msra.mxu0 0.0
      %892 = vmatprep.subr.mxu0 0.0
      %893 = vmatpush1.msra.mxu0 0.0
      %894 = vmatprep.subr.mxu0 0.0
      %895 = vmatpush1.msra.mxu0 0.0
      %896 = vmatprep.subr.mxu0 0.0
      %897 = vmatpush1.msra.mxu0 0.0
      %898 = vmatprep.subr.mxu0 0.0
      %899 = vmatpush1.msra.mxu0 0.0
      %900 = vmatprep.subr.mxu0 0.0
      %901 = vmatpush1.msra.mxu0 0.0
      %902 = vmatprep.subr.mxu0 0.0
      %903 = vmatpush1.msra.mxu0 0.0
      %904 = vmatprep.subr.mxu0 0.0
      %905 = vmatpush1.msra.mxu0 0.0
      %906 = vmatprep.mubr.f32.mxu0 0.0
      %907 = vmatmul.mubr.f32.gmra.mrb[0].mxu0 %v819
      %v908 = vpop.f32.mrb[0].mxu0
      %v909 = vadd.f32 0.0, %v908
      %v910 = vpop.f32.mrb[0].mxu0
      %911 = vmatprep.mubr.f32.mxu0 0.0
      %912 = vmatmul.mubr.f32.gmra.mrb[0].mxu0 %v822
      %v913 = vpop.f32.mrb[0].mxu0
      %v914 = vadd.f32 0.0, %v913
      %v915 = vpop.f32.mrb[0].mxu0
      %916 = vmatprep.mubr.f32.mxu0 0.0
      %917 = vmatmul.mubr.f32.gmra.mrb[0].mxu0 %v825
      %v918 = vpop.f32.mrb[0].mxu0
      %v919 = vadd.f32 0.0, %v918
      %v920 = vpop.f32.mrb[0].mxu0
      %921 = vmatprep.mubr.f32.mxu0 0.0
      %922 = vmatmul.mubr.f32.gmra.mrb[0].mxu0 %v828
      %v923 = vpop.f32.mrb[0].mxu0
      %v924 = vadd.f32 0.0, %v923
      %v925 = vpop.f32.mrb[0].mxu0
      %926 = vmatprep.mubr.f32.mxu0 0.0
      %927 = vmatmul.mubr.f32.gmra.mrb[0].mxu0 %v831
      %v928 = vpop.f32.mrb[0].mxu0
      %v929 = vadd.f32 0.0, %v928
      %v930 = vpop.f32.mrb[0].mxu0
      %931 = vmatprep.mubr.f32.mxu0 0.0
      %932 = vmatmul.mubr.f32.gmra.mrb[0].mxu0 %v834
      %v933 = vpop.f32.mrb[0].mxu0
      %v934 = vadd.f32 0.0, %v933
      %v935 = vpop.f32.mrb[0].mxu0
      %936 = vmatprep.mubr.f32.mxu0 0.0
      %937 = vmatmul.mubr.f32.gmra.mrb[0].mxu0 %v837
      %v938 = vpop.f32.mrb[0].mxu0
      %v939 = vadd.f32 0.0, %v938
      %v940 = vpop.f32.mrb[0].mxu0
      %941 = vmatprep.mubr.f32.mxu0 0.0
      %942 = vmatmul.mubr.f32.gmra.mrb[0].mxu0 %v840
      %v943 = vpop.f32.mrb[0].mxu0
      %v944 = vadd.f32 0.0, %v943
      %v945 = vpop.f32.mrb[0].mxu0
      %946 = vdwg.mxu0
      %s947 = sld [smem:[#allocation4]]
      %948 = vxpose.xlu0.b32.start [1/16] %v909, 128
      %949 = vxpose.xlu0.b32.cont [2/16] %v914, 128
      %950 = vxpose.xlu0.b32.cont [3/16] %v919, 128
      %951 = vxpose.xlu0.b32.cont [4/16] %v924, 128
      %952 = vxpose.xlu0.b32.cont [5/16] %v929, 128
      %953 = vxpose.xlu0.b32.cont [6/16] %v934, 128
      %954 = vxpose.xlu0.b32.cont [7/16] %v939, 128
      %955 = vxpose.xlu0.b32.cont [8/16] %v944, 128
      %956 = vxpose.xlu0.b32.cont [9/16] 0.0, 128
      %957 = vxpose.xlu0.b32.cont [10/16] 0.0, 128
      %958 = vxpose.xlu0.b32.cont [11/16] 0.0, 128
      %959 = vxpose.xlu0.b32.cont [12/16] 0.0, 128
      %960 = vxpose.xlu0.b32.cont [13/16] 0.0, 128
      %961 = vxpose.xlu0.b32.cont [14/16] 0.0, 128
      %962 = vxpose.xlu0.b32.cont [15/16] 0.0, 128
      %963 = vxpose.xlu0.b32.end [16/16] 0.0, 128
      %v964 = vpop.trf.xlu0
      %v965 = vpop.trf.xlu0
      %v966 = vpop.trf.xlu0
      %v967 = vpop.trf.xlu0
      %v968 = vpop.trf.xlu0
      %v969 = vpop.trf.xlu0
      %v970 = vpop.trf.xlu0
      %v971 = vpop.trf.xlu0
      %v972 = vpop.trf.xlu0
      %v973 = vpop.trf.xlu0
      %v974 = vpop.trf.xlu0
      %v975 = vpop.trf.xlu0
      %v976 = vpop.trf.xlu0
      %v977 = vpop.trf.xlu0
      %v978 = vpop.trf.xlu0
      %v979 = vpop.trf.xlu0
      %v980 = vstv %s947
      %v981 = vmul.f32 %v980, %v964
      %v982 = vmul.f32 %v980, %v965
      %v983 = vmul.f32 %v980, %v966
      %v984 = vmul.f32 %v980, %v967
      %v985 = vld [vmem:[%s331] sm:$0xff]
      %v986 = vld [vmem:[%s331 + $0x8] sm:$0xff]
      %v987 = vld [vmem:[%s331 + $0x10] sm:$0xff]
      %v988 = vld [vmem:[%s331 + $0x18] sm:$0xff]
      %v989 = vadd.f32 %v981, %v985
      %v990 = vadd.f32 %v982, %v986
      %v991 = vadd.f32 %v983, %v987
      %v992 = vadd.f32 %v984, %v988
      %993 = vst.msk [vmem:[%s339] sm:$0xff] %vm721, %v989
      %994 = vst.msk [vmem:[%s339 + $0x8] sm:$0xff] %vm721, %v990
      %995 = vst.msk [vmem:[%s339 + $0x10] sm:$0xff] %vm721, %v991
      %996 = vst.msk [vmem:[%s339 + $0x18] sm:$0xff] %vm721, %v992
      %p997 = scmp.lt.s32.totalorder %s22, 1
      %s998 = scalar_select %p997, %s22, 1
      %p999 = scmp.lt.s32.totalorder %s23, 0
      %s1000 = scalar_select %p999, %s23, 0
      %s1001 = smul.addr %s998, 4
      %s1002 = sadd.s32 %s1000, %s1001
      %s1003 = smul.addr %s1002, 8
      %s1004 = scalar_lea.vmem %s6, %s1003
      // Predicated region
      $region49: #{progressive_luong_attention.3} parent=43 // pred_check
        %p1005 = pneg %p195
      $region50: #{progressive_luong_attention.3} parent=43 // pred_check_branch
        %1007 = sbr.rel (%p1005) target = $region52
      $region51: #{progressive_luong_attention.3} parent=43 // pred_region
        _
      $region52: #{progressive_luong_attention.3} parent=43 // pred_fallthru
        _
    $region44: #{progressive_luong_attention.3} parent=5 // pred_fallthru
      _
    %p1008 = scmp.le.s32.totalorder 2, %s13
    // Predicated region
    $region53: #{progressive_luong_attention.3} parent=5 // pred_check
      %p1009 = pneg %p1008
    $region54: #{progressive_luong_attention.3} parent=5 // pred_check_branch
      %1011 = sbr.rel (%p1009) target = $region56
    $region55: #{progressive_luong_attention.3} parent=5 // pred_region
      %s1012 = ssub.s32 %s13, 2
      // Predicated region
      $region57: #{progressive_luong_attention.3} parent=55 // pred_check
        %p1013 = pneg %p201
      $region58: #{progressive_luong_attention.3} parent=55 // pred_check_branch
        %1015 = sbr.rel (%p1013) target = $region60
      $region59: #{progressive_luong_attention.3} parent=55 // pred_region
        %p1016 = scmp.lt.s32.totalorder %s24, 1
        %s1017 = scalar_select %p1016, %s24, 1
        %p1018 = scmp.lt.s32.totalorder %s25, 0
        %s1019 = scalar_select %p1018, %s25, 0
        %s1020 = smul.addr %s1017, 4
        %s1021 = sadd.s32 %s1019, %s1020
        %s1022 = smul.addr %s1021, 8
        %s1023 = scalar_lea.vmem %s6, %s1022
      $region60: #{progressive_luong_attention.3} parent=55 // pred_fallthru
        _
    $region56: #{progressive_luong_attention.3} parent=5 // pred_fallthru
      _
  $region6: #{progressive_luong_attention.3} parent=0 // loop_footer
    %s17 = sadd.s32 1, %s13
  $region7: #{progressive_luong_attention.3} parent=0 // loop_footer_branch
    %12 = sbr.rel target = $region3
  $region8: #{progressive_luong_attention.3} parent=0 // loop_exit
    _

</llo_original>
